<compile_context>
chip_gen: v5e
topology: v5e:2x2
jax: 0.10.0
libtpu: 0.0.40
codegen_flags: <defaults>
</compile_context>

<pallas_src>
import functools

import jax
import jax.numpy as jnp
from jax.experimental import pallas as pl
from jax.experimental.pallas import tpu as pltpu


def _round_up(x, m):
    return (x + m - 1) // m * m


def _pick_row_tile(oh, ow, target_rows=512):
    """Largest divisor d of OH with d*OW <= target_rows and d*OW % 8 == 0."""
    best = None
    for d in range(1, oh + 1):
        if oh % d:
            continue
        rows = d * ow
        if rows <= max(target_rows, ow) and (rows % 8 == 0 or d == oh):
            best = d
    return best if best is not None else oh


def _conv_leaky_kernel(x_ref, w_ref, o_ref, *, kh, kw, stride, toh, ow, cin,
                       neg_slope):
    """One (batch, cout-tile, row-tile) grid step: im2col conv + LeakyReLU.

    x_ref: (H_pad, W_pad, Cin)     zero-padded image of this batch element
                                   (VMEM resident across all inner grid steps)
    w_ref: (KH*KW*Cin, COUT_T)     one Cout tile of the reshaped weight
    o_ref: (TOH*OW, COUT_T)        output rows of this tile
    """
    row_step = toh * stride
    row0 = pl.program_id(2) * row_step
    if row_step % 8 == 0:
        row0 = pl.multiple_of(row0, 8)   # aligned sublane loads of the windows
    tm = toh * ow

    # In-VMEM im2col: fold all KH*KW taps into the MXU contraction dimension
    # (K = KH*KW*Cin) so there is a single matmul and a single accumulator /
    # output store per grid step instead of KH*KW K=Cin dots.
    taps = []
    for i in range(kh):
        for j in range(kw):
            if stride == 1:
                xij = x_ref[pl.ds(row0 + i, toh), pl.ds(j, ow), :]
            else:
                # TODO(synk): a wrapper-side space-to-depth would make the
                # kernel always stride-1 and fold stride^2 into K as well.
                xij = x_ref[pl.ds(row0 + i, toh, stride=stride),
                            pl.ds(j, ow, stride=stride), :]
            taps.append(xij.reshape(tm, cin))
    patches = jnp.concatenate(taps, axis=-1)             # (TM, KH*KW*Cin)

    acc = jnp.dot(patches, w_ref[...], preferred_element_type=jnp.float32)
    acc = jnp.maximum(acc, neg_slope * acc)               # fused LeakyReLU(0.1)
    o_ref[...] = acc.astype(o_ref.dtype)


@functools.partial(jax.jit,
                   static_argnames=("conv_stride", "padding", "compute_dtype"))
def convention_forward(x_nchw, weight_ochw, conv_stride, padding,
                       compute_dtype=jnp.bfloat16):
    """Equivalent of Convention.forward (Conv2d bias=False + LeakyReLU(0.1)).

    x_nchw:      (N, Cin, H, W)        PyTorch NCHW input
    weight_ochw: (Cout, Cin, KH, KW)   PyTorch Conv2d weight layout
    returns:     (N, Cout, OH, OW)     NCHW output, matching PyTorch
    """
    n, cin, h, w = x_nchw.shape
    cout, _, kh, kw = weight_ochw.shape
    oh = (h + 2 * padding - kh) // conv_stride + 1
    ow = (w + 2 * padding - kw) // conv_stride + 1
    out_dtype = x_nchw.dtype

    # NCHW -> NHWC, zero-pad, cast to the MXU compute dtype (fused by XLA into
    # one HBM pass on the input side).
    x_nhwc = jnp.transpose(x_nchw, (0, 2, 3, 1))
    x_pad = jnp.pad(
        x_nhwc, ((0, 0), (padding, padding), (padding, padding), (0, 0))
    ).astype(compute_dtype)
    h_pad, w_pad = h + 2 * padding, w + 2 * padding

    # Weight (Cout, Cin, KH, KW) -> (KH*KW*Cin, Cout).  Cout tiling policy:
    #  * Cout < 128:  emit unpadded (masked stores, but no 16x write
    #                 amplification and no crop epilogue for tiny Cout).
    #  * Cout >= 128: pad to a lane-dense multiple (256 when it divides,
    #                 matching the 2x256^2 MXU on v6e/v7x, else 128).
    k = kh * kw * cin
    if cout < 128:
        cout_block = cout
        cout_pad = cout
    else:
        cout_block = 256 if cout % 256 == 0 else 128
        cout_pad = _round_up(cout, cout_block)
    w2d = jnp.transpose(weight_ochw, (2, 3, 1, 0)).reshape(k, cout)
    if cout_pad != cout:
        w2d = jnp.pad(w2d, ((0, 0), (0, cout_pad - cout)))
    w2d = w2d.astype(compute_dtype)

    toh = _pick_row_tile(oh, ow)          # output-row tile (divides OH)
    tm = toh * ow
    n_t = oh // toh
    n_co = cout_pad // cout_block

    kernel = functools.partial(
        _conv_leaky_kernel, kh=kh, kw=kw, stride=conv_stride,
        toh=toh, ow=ow, cin=cin, neg_slope=0.1)

    c_item = jnp.dtype(compute_dtype).itemsize
    o_item = jnp.dtype(out_dtype).itemsize
    x_blk = h_pad * w_pad * cin * c_item
    w_blk = k * cout_block * c_item
    o_blk = tm * cout_block * o_item
    # Double-buffered blocks + f32 im2col/accumulator working set + margin.
    vmem_limit = int(min(max(2 * (x_blk + w_blk + o_blk)
                             + tm * k * 4 + tm * cout_block * 4 + (4 << 20),
                             16 << 20), 100 << 20))
    # TODO(synk): halo-tile the input over H with pltpu.make_async_copy when
    # 2*x_blk approaches the v7x 64 MiB VMEM budget.

    flops = 2 * n * oh * ow * k * cout_pad
    bytes_accessed = (x_pad.size * c_item              # each image fetched once
                      + n * n_co * w_blk               # weight tile per (b, c)
                      + n * oh * ow * cout_pad * o_item)

    # Grid order (batch, cout-tile, row-tile): the weight block index is
    # constant across the innermost row-tile axis (stays VMEM resident) and
    # the whole-image input block is constant across both inner axes.
    out2d = pl.pallas_call(
        kernel,
        out_shape=jax.ShapeDtypeStruct((n, oh * ow, cout_pad), out_dtype),
        grid=(n, n_co, n_t),
        in_specs=[
            pl.BlockSpec((None, h_pad, w_pad, cin),
                         lambda b, c, t: (b, 0, 0, 0)),
            pl.BlockSpec((k, cout_block), lambda b, c, t: (0, c)),
        ],
        out_specs=pl.BlockSpec((None, tm, cout_block),
                               lambda b, c, t: (b, t, c)),
        compiler_params=pltpu.CompilerParams(
            dimension_semantics=("parallel", "parallel", "parallel"),
            vmem_limit_bytes=vmem_limit),
        cost_estimate=pl.CostEstimate(
            flops=flops, transcendentals=0, bytes_accessed=bytes_accessed),
    )(x_pad, w2d)

    out = out2d[:, :, :cout] if cout_pad != cout else out2d
    out_nhwc = out.reshape(n, oh, ow, cout)
    return jnp.transpose(out_nhwc, (0, 3, 1, 2))


if __name__ == "__main__":
    # Small shapes consistent with the module: batch=2, Cin=4, spatial=16x16,
    # Cout=8, conv_size=3, stride=1, padding=1.
    N, CIN, H, W = 2, 4, 16, 16
    COUT, KSIZE, STRIDE, PAD = 8, 3, 1, 1

    key = jax.random.PRNGKey(0)
    kx, kwt = jax.random.split(key)

    x = jax.random.normal(kx, (N, CIN, H, W), dtype=jnp.float32)

    # Kaiming-normal-style init (matches weight_init intent):
    # std = sqrt(2 / fan_in), fan_in = Cin * KH * KW.
    fan_in = CIN * KSIZE * KSIZE
    weight = jax.random.normal(
        kwt, (COUT, CIN, KSIZE, KSIZE), dtype=jnp.float32
    ) * jnp.sqrt(2.0 / fan_in)

    # Plain-JAX reference: conv + LeakyReLU(0.1).
    ref = jax.lax.conv_general_dilated(
        x, weight, (STRIDE, STRIDE), [(PAD, PAD), (PAD, PAD)],
        dimension_numbers=("NCHW", "OIHW", "NCHW"),
    )
    ref = jnp.where(ref >= 0, ref, 0.1 * ref)

    # Exact-numerics path (matches PyTorch f32 semantics).
    out_f32 = convention_forward(x, weight, conv_stride=STRIDE, padding=PAD,
                                 compute_dtype=jnp.float32)
    out_f32 = jax.block_until_ready(out_f32)
    assert out_f32.shape == (N, COUT, H, W), out_f32.shape
    assert jnp.allclose(out_f32, ref, atol=2e-4, rtol=2e-4), "f32 mismatch"

    # Default fast path: bf16 operands on the MXU, f32 accumulation.
    out_bf16 = convention_forward(x, weight, conv_stride=STRIDE, padding=PAD)
    out_bf16 = jax.block_until_ready(out_bf16)
    assert out_bf16.shape == (N, COUT, H, W), out_bf16.shape
    assert jnp.allclose(out_bf16, ref, atol=1e-1, rtol=5e-2), "bf16 mismatch"

    print("KERNEL_OK")
</pallas_src>

<mosaic_0001>
module attributes {stable_mosaic.version = 11 : i64} {
  func.func @_conv_leaky_kernel(%arg0: i32, %arg1: i32, %arg2: i32, %arg3: memref<1x18x18x4xf32, #tpu.memory_space<vmem>>, %arg4: memref<36x8xf32, #tpu.memory_space<vmem>>, %arg5: memref<1x256x8xf32, #tpu.memory_space<vmem>>) attributes {dimension_semantics = [#tpu.dimension_semantics<parallel>, #tpu.dimension_semantics<parallel>, #tpu.dimension_semantics<parallel>], iteration_bounds = array<i64: 2, 1, 1>, scalar_prefetch = 0 : i64, scratch_operands = 0 : i64, tpu.core_type = #tpu.core_type<tc>, window_params = [{transform_indices = @transform_0, window_bounds = array<i64: 1, 18, 18, 4>}, {transform_indices = @transform_1, window_bounds = array<i64: 36, 8>}, {transform_indices = @transform_2, window_bounds = array<i64: 1, 256, 8>}]} {
    %c16_i32 = arith.constant 16 : i32
    %0 = arith.muli %arg2, %c16_i32 : i32
    %1 = tpu.assume_multiple %0, 8 : i32
    %c0_i32 = arith.constant 0 : i32
    %2 = arith.addi %1, %c0_i32 : i32
    %c0 = arith.constant 0 : index
    %3 = arith.index_cast %2 : i32 to index
    %c0_0 = arith.constant 0 : index
    %c0_1 = arith.constant 0 : index
    %4 = vector.load %arg3[%c0, %3, %c0_0, %c0_1] : memref<1x18x18x4xf32, #tpu.memory_space<vmem>>, vector<1x16x16x4xf32>
    %5 = vector.shape_cast %4 : vector<1x16x16x4xf32> to vector<16x16x4xf32>
    %6 = vector.shape_cast %5 : vector<16x16x4xf32> to vector<256x4xf32>
    %c0_i32_2 = arith.constant 0 : i32
    %7 = arith.addi %1, %c0_i32_2 : i32
    %c0_3 = arith.constant 0 : index
    %8 = arith.index_cast %7 : i32 to index
    %c1 = arith.constant 1 : index
    %c0_4 = arith.constant 0 : index
    %9 = vector.load %arg3[%c0_3, %8, %c1, %c0_4] : memref<1x18x18x4xf32, #tpu.memory_space<vmem>>, vector<1x16x16x4xf32>
    %10 = vector.shape_cast %9 : vector<1x16x16x4xf32> to vector<16x16x4xf32>
    %11 = vector.shape_cast %10 : vector<16x16x4xf32> to vector<256x4xf32>
    %c0_i32_5 = arith.constant 0 : i32
    %12 = arith.addi %1, %c0_i32_5 : i32
    %c0_6 = arith.constant 0 : index
    %13 = arith.index_cast %12 : i32 to index
    %c2 = arith.constant 2 : index
    %c0_7 = arith.constant 0 : index
    %14 = vector.load %arg3[%c0_6, %13, %c2, %c0_7] : memref<1x18x18x4xf32, #tpu.memory_space<vmem>>, vector<1x16x16x4xf32>
    %15 = vector.shape_cast %14 : vector<1x16x16x4xf32> to vector<16x16x4xf32>
    %16 = vector.shape_cast %15 : vector<16x16x4xf32> to vector<256x4xf32>
    %c1_i32 = arith.constant 1 : i32
    %17 = arith.addi %1, %c1_i32 : i32
    %c0_8 = arith.constant 0 : index
    %18 = arith.index_cast %17 : i32 to index
    %c0_9 = arith.constant 0 : index
    %c0_10 = arith.constant 0 : index
    %19 = vector.load %arg3[%c0_8, %18, %c0_9, %c0_10] : memref<1x18x18x4xf32, #tpu.memory_space<vmem>>, vector<1x16x16x4xf32>
    %20 = vector.shape_cast %19 : vector<1x16x16x4xf32> to vector<16x16x4xf32>
    %21 = vector.shape_cast %20 : vector<16x16x4xf32> to vector<256x4xf32>
    %c1_i32_11 = arith.constant 1 : i32
    %22 = arith.addi %1, %c1_i32_11 : i32
    %c0_12 = arith.constant 0 : index
    %23 = arith.index_cast %22 : i32 to index
    %c1_13 = arith.constant 1 : index
    %c0_14 = arith.constant 0 : index
    %24 = vector.load %arg3[%c0_12, %23, %c1_13, %c0_14] : memref<1x18x18x4xf32, #tpu.memory_space<vmem>>, vector<1x16x16x4xf32>
    %25 = vector.shape_cast %24 : vector<1x16x16x4xf32> to vector<16x16x4xf32>
    %26 = vector.shape_cast %25 : vector<16x16x4xf32> to vector<256x4xf32>
    %c1_i32_15 = arith.constant 1 : i32
    %27 = arith.addi %1, %c1_i32_15 : i32
    %c0_16 = arith.constant 0 : index
    %28 = arith.index_cast %27 : i32 to index
    %c2_17 = arith.constant 2 : index
    %c0_18 = arith.constant 0 : index
    %29 = vector.load %arg3[%c0_16, %28, %c2_17, %c0_18] : memref<1x18x18x4xf32, #tpu.memory_space<vmem>>, vector<1x16x16x4xf32>
    %30 = vector.shape_cast %29 : vector<1x16x16x4xf32> to vector<16x16x4xf32>
    %31 = vector.shape_cast %30 : vector<16x16x4xf32> to vector<256x4xf32>
    %c2_i32 = arith.constant 2 : i32
    %32 = arith.addi %1, %c2_i32 : i32
    %c0_19 = arith.constant 0 : index
    %33 = arith.index_cast %32 : i32 to index
    %c0_20 = arith.constant 0 : index
    %c0_21 = arith.constant 0 : index
    %34 = vector.load %arg3[%c0_19, %33, %c0_20, %c0_21] : memref<1x18x18x4xf32, #tpu.memory_space<vmem>>, vector<1x16x16x4xf32>
    %35 = vector.shape_cast %34 : vector<1x16x16x4xf32> to vector<16x16x4xf32>
    %36 = vector.shape_cast %35 : vector<16x16x4xf32> to vector<256x4xf32>
    %c2_i32_22 = arith.constant 2 : i32
    %37 = arith.addi %1, %c2_i32_22 : i32
    %c0_23 = arith.constant 0 : index
    %38 = arith.index_cast %37 : i32 to index
    %c1_24 = arith.constant 1 : index
    %c0_25 = arith.constant 0 : index
    %39 = vector.load %arg3[%c0_23, %38, %c1_24, %c0_25] : memref<1x18x18x4xf32, #tpu.memory_space<vmem>>, vector<1x16x16x4xf32>
    %40 = vector.shape_cast %39 : vector<1x16x16x4xf32> to vector<16x16x4xf32>
    %41 = vector.shape_cast %40 : vector<16x16x4xf32> to vector<256x4xf32>
    %c2_i32_26 = arith.constant 2 : i32
    %42 = arith.addi %1, %c2_i32_26 : i32
    %c0_27 = arith.constant 0 : index
    %43 = arith.index_cast %42 : i32 to index
    %c2_28 = arith.constant 2 : index
    %c0_29 = arith.constant 0 : index
    %44 = vector.load %arg3[%c0_27, %43, %c2_28, %c0_29] : memref<1x18x18x4xf32, #tpu.memory_space<vmem>>, vector<1x16x16x4xf32>
    %45 = vector.shape_cast %44 : vector<1x16x16x4xf32> to vector<16x16x4xf32>
    %46 = vector.shape_cast %45 : vector<16x16x4xf32> to vector<256x4xf32>
    %47 = tpu.concatenate %6, %11, %16, %21, %26, %31, %36, %41, %46 in 1 : vector<256x4xf32>, vector<256x4xf32>, vector<256x4xf32>, vector<256x4xf32>, vector<256x4xf32>, vector<256x4xf32>, vector<256x4xf32>, vector<256x4xf32>, vector<256x4xf32> -> vector<256x36xf32>
    %c0_30 = arith.constant 0 : index
    %c0_31 = arith.constant 0 : index
    %48 = vector.load %arg4[%c0_30, %c0_31] : memref<36x8xf32, #tpu.memory_space<vmem>>, vector<36x8xf32>
    %cst = arith.constant dense<0.000000e+00> : vector<256x8xf32>
    %49 = tpu.matmul %47, %48, %cst {dimension_numbers = #tpu.dot_dimension_numbers<[1], [0], [0], [1], [0, 0, 1, 1], [], []>} : vector<256x36xf32>, vector<36x8xf32>, vector<256x8xf32> -> vector<256x8xf32>
    %cst_32 = arith.constant 1.000000e-01 : f32
    %50 = vector.broadcast %cst_32 : f32 to vector<256x8xf32>
    %51 = arith.mulf %50, %49 : vector<256x8xf32>
    %52 = arith.maximumf %49, %51 : vector<256x8xf32>
    %c0_33 = arith.constant 0 : index
    %c0_34 = arith.constant 0 : index
    %c0_35 = arith.constant 0 : index
    %53 = vector.load %arg5[%c0_33, %c0_34, %c0_35] : memref<1x256x8xf32, #tpu.memory_space<vmem>>, vector<1x256x8xf32>
    %54 = vector.shape_cast %53 : vector<1x256x8xf32> to vector<256x8xf32>
    %55 = vector.shape_cast %52 : vector<256x8xf32> to vector<1x256x8xf32>
    tpu.vector_store %arg5[%c0_33, %c0_34, %c0_35], %55 {strides = array<i32>} : memref<1x256x8xf32, #tpu.memory_space<vmem>>, vector<1x256x8xf32>,
    return
  }
  func.func @transform_0(%arg0: i32, %arg1: i32, %arg2: i32) -> (i32, i32, i32, i32) {
    %c0_i32 = arith.constant 0 : i32
    %c0_i32_0 = arith.constant 0 : i32
    %c0_i32_1 = arith.constant 0 : i32
    %c0_i32_2 = arith.constant 0 : i32
    return %arg0, %c0_i32, %c0_i32_0, %c0_i32_1 : i32, i32, i32, i32
  }
  func.func @transform_1(%arg0: i32, %arg1: i32, %arg2: i32) -> (i32, i32) {
    %c0_i32 = arith.constant 0 : i32
    %c0_i32_0 = arith.constant 0 : i32
    return %c0_i32, %arg1 : i32, i32
  }
  func.func @transform_2(%arg0: i32, %arg1: i32, %arg2: i32) -> (i32, i32, i32) {
    %c0_i32 = arith.constant 0 : i32
    return %arg0, %arg2, %arg1 : i32, i32, i32
  }
}

</mosaic_0001>

<llo_original>
// kernel: convention_forward.1
$region0: #{convention_forward.1}
  #allocation0 [shape = 'u32[]', space=smem, size = 0x4, offset = 0x4, fixed_abs, tag = 'smem constant byte address 0x4 - core index']
  #allocation1 [shape = 'u32[72,128]{1,0:T(1,128)}', space=vmem, size = 0x9000, scoped, tag = 'internal scratch']
  %s0 = inlined_call_operand.vmem [shape: f32[2,18,18,4], index: 0, kind: input, shape index: {}]
  %s1 = inlined_call_operand.vmem [shape: f32[36,8], index: 1, kind: input, shape index: {}]
  %s2 = inlined_call_operand.vmem [shape: f32[2,256,8], index: 2, kind: output, shape index: {}]
  %s3 = sld [smem:[#allocation0]]
  $region41: #{convention_forward.1} parent=0
    _
  %s5 = ssub.s32 1, %s3
  %s6 = scalar_select 0, %s5, %s3
  loop: start=0, step=1, limit=4
  $region2: #{convention_forward.1} parent=0 // loop_pre_header
    _
  $region3: #{convention_forward.1} parent=0 // loop_header
    %s8 = sphi 0, %s12
    %p9 = scmp.ge.s32.totalorder %s8, 4
    %s15 = sphi 0, %s34
    %s16 = sphi 0, %s30
    %s17 = sphi 0, %s26
    %s18 = sphi 0, %s15
    %s19 = sphi 0, %s16
    %s20 = sphi 0, %s17
    %s21 = sphi 0, %s18
    %s22 = sphi 0, %s19
    %s23 = sphi 0, %s20
    %s37 = sphi 0, %s39
    %s40 = sphi 0, %s37
    %s41 = sphi 0, %s40
    %s57 = sphi 0, %s41
    %s63 = sphi 0, %s65
    %s66 = sphi 0, %s63
    %s67 = sphi 0, %s66
    %s83 = sphi 0, %s67
    %s93 = sphi 0, %s95
    %s96 = sphi 0, %s93
    %s97 = sphi 0, %s96
    %s113 = sphi 0, %s97
  $region4: #{convention_forward.1} parent=0 // loop_header_branch
    %11 = sbr.rel (%p9) target = $region8
  $region5: #{convention_forward.1} parent=0 // loop_body
    %s13 = ssub.s32 %s8, 1
    %s14 = ssub.s32 %s8, 2
    %s24 = sadd.s32 1, %s17
    %p25 = scmp.ge.s32.totalorder %s24, 1
    %s26 = scalar_select %p25, 0, %s24
    %s27 = sadd.s32 1, %s16
    %s28 = scalar_select %p25, %s27, %s16
    %p29 = scmp.ge.s32.totalorder %s28, 1
    %s30 = scalar_select %p29, 0, %s28
    %s31 = sadd.s32 1, %s15
    %s32 = scalar_select %p29, %s31, %s15
    %p33 = scmp.ge.s32.totalorder %s32, 2
    %s34 = scalar_select %p33, 0, %s32
    %s35 = ssub.s32 %s15, %s34
    %p36 = scmp.eq.s32.totalorder %s35, 0
    %s38 = sadd.s32 %s37, 1
    %s39 = scalar_select %p36, %s37, %s38
    %p42 = pneg %p36
    %p43 = scmp.eq.s32.totalorder %s8, 1
    %p44 = por %p42, %p43
    %p45 = scmp.ne.s32.totalorder %s37, %s40
    %p46 = scmp.eq.s32.totalorder %s8, 0
    %p47 = por %p45, %p46
    %p48 = scmp.ne.s32.totalorder %s37, %s40
    %p49 = scmp.eq.s32.totalorder %s13, 1
    %p50 = por %p48, %p49
    %p51 = scmp.ne.s32.totalorder %s40, %s41
    %p52 = scmp.eq.s32.totalorder %s13, 0
    %p53 = por %p51, %p52
    %p54 = scmp.ne.s32.totalorder %s40, %s41
    %p55 = scmp.eq.s32.totalorder %s14, 1
    %p56 = por %p54, %p55
    %p58 = scmp.ne.s32.totalorder %s41, %s57
    %p59 = scmp.eq.s32.totalorder %s14, 0
    %p60 = por %p58, %p59
    %s61 = ssub.s32 %s16, %s30
    %p62 = scmp.eq.s32.totalorder %s61, 0
    %s64 = sadd.s32 %s63, 1
    %s65 = scalar_select %p62, %s63, %s64
    %p68 = pneg %p62
    %p69 = scmp.eq.s32.totalorder %s8, 1
    %p70 = por %p68, %p69
    %p71 = scmp.ne.s32.totalorder %s63, %s66
    %p72 = scmp.eq.s32.totalorder %s8, 0
    %p73 = por %p71, %p72
    %p74 = scmp.ne.s32.totalorder %s63, %s66
    %p75 = scmp.eq.s32.totalorder %s13, 1
    %p76 = por %p74, %p75
    %p77 = scmp.ne.s32.totalorder %s66, %s67
    %p78 = scmp.eq.s32.totalorder %s13, 0
    %p79 = por %p77, %p78
    %p80 = scmp.ne.s32.totalorder %s66, %s67
    %p81 = scmp.eq.s32.totalorder %s14, 1
    %p82 = por %p80, %p81
    %p84 = scmp.ne.s32.totalorder %s67, %s83
    %p85 = scmp.eq.s32.totalorder %s14, 0
    %p86 = por %p84, %p85
    %s87 = ssub.s32 %s15, %s34
    %s88 = ssub.s32 %s17, %s26
    %s89 = sor.u32 %s87, %s88
    %s90 = ssub.s32 %s16, %s30
    %s91 = sor.u32 %s89, %s90
    %p92 = scmp.eq.s32.totalorder %s91, 0
    %s94 = sadd.s32 %s93, 1
    %s95 = scalar_select %p92, %s93, %s94
    %p98 = pneg %p92
    %p99 = scmp.eq.s32.totalorder %s8, 1
    %p100 = por %p98, %p99
    %p101 = scmp.ne.s32.totalorder %s93, %s96
    %p102 = scmp.eq.s32.totalorder %s8, 0
    %p103 = por %p101, %p102
    %p104 = scmp.ne.s32.totalorder %s93, %s96
    %p105 = scmp.eq.s32.totalorder %s13, 1
    %p106 = por %p104, %p105
    %p107 = scmp.ne.s32.totalorder %s96, %s97
    %p108 = scmp.eq.s32.totalorder %s13, 0
    %p109 = por %p107, %p108
    %p110 = scmp.ne.s32.totalorder %s96, %s97
    %p111 = scmp.eq.s32.totalorder %s14, 1
    %p112 = por %p110, %p111
    %p114 = scmp.ne.s32.totalorder %s97, %s113
    %p115 = scmp.eq.s32.totalorder %s14, 0
    %p116 = por %p114, %p115
    %p117 = scmp.le.s32.totalorder 1, %s8
    %p118 = scmp.lt.s32.totalorder %s8, 3
    %p119 = pnand %p117, %p118
    %p120 = pneg %p119
    // Predicated region
    $region9: #{convention_forward.1} parent=5 // pred_check
      _
    $region10: #{convention_forward.1} parent=5 // pred_check_branch
      %122 = sbr.rel (%p119) target = $region12
    $region11: #{convention_forward.1} parent=5 // pred_region
      %s123 = ssub.s32 %s8, 1
      // Predicated region
      $region13: #{convention_forward.1} parent=11 // pred_check
        %p124 = pneg %p79
      $region14: #{convention_forward.1} parent=11 // pred_check_branch
        %126 = sbr.rel (%p124) target = $region16
      $region15: #{convention_forward.1} parent=11 // pred_region
        %p127 = scmp.lt.s32.totalorder %s19, 0
        %s128 = scalar_select %p127, %s19, 0
        %s129 = smul.addr %s128, 8
        %s130 = scalar_lea.vmem %s1, %s129
      $region16: #{convention_forward.1} parent=11 // pred_fallthru
        _
    $region12: #{convention_forward.1} parent=5 // pred_fallthru
      _
    %p131 = scmp.lt.s32.totalorder %s8, 2
    // Predicated region
    $region17: #{convention_forward.1} parent=5 // pred_check
      %p132 = pneg %p131
    $region18: #{convention_forward.1} parent=5 // pred_check_branch
      %134 = sbr.rel (%p132) target = $region20
    $region19: #{convention_forward.1} parent=5 // pred_region
      // Predicated region
      $region21: #{convention_forward.1} parent=19 // pred_check
        %p135 = pneg %p47
      $region22: #{convention_forward.1} parent=19 // pred_check_branch
        %137 = sbr.rel (%p135) target = $region24
      $region23: #{convention_forward.1} parent=19 // pred_region
        %p138 = scmp.lt.s32.totalorder %s15, 1
        %s139 = scalar_select %p138, %s15, 1
        %s140 = smul.addr %s139, 54
        %s141 = smul.addr %s140, 8
        %s142 = scalar_lea.vmem %s0, %s141
      $region24: #{convention_forward.1} parent=19 // pred_fallthru
        _
    $region20: #{convention_forward.1} parent=5 // pred_fallthru
      _
    %p143 = scmp.le.s32.totalorder 1, %s8
    %p144 = scmp.lt.s32.totalorder %s8, 3
    %p145 = pnand %p143, %p144
    %p146 = pneg %p145
    // Predicated region
    $region25: #{convention_forward.1} parent=5 // pred_check
      _
    $region26: #{convention_forward.1} parent=5 // pred_check_branch
      %148 = sbr.rel (%p145) target = $region28
    $region27: #{convention_forward.1} parent=5 // pred_region
      %s149 = ssub.s32 %s8, 1
      %p150 = scmp.lt.s32.totalorder %s18, 1
      %s151 = scalar_select %p150, %s18, 1
      %s152 = smul.addr %s151, 54
      %s153 = smul.addr %s152, 8
      %s154 = scalar_lea.vmem %s0, %s153
      %p155 = pneg %p53
      %p156 = pneg %p50
      %p157 = scmp.lt.s32.totalorder %s19, 0
      %s158 = scalar_select %p157, %s19, 0
      %s159 = smul.addr %s158, 8
      %s160 = scalar_lea.vmem %s1, %s159
      %p161 = pneg %p79
      %p162 = pneg %p76
      %p163 = pneg %p109
      %p164 = pneg %p106
      %s165 = smul.u32 32, %s20
      %p166 = scmp.lt.s32.totalorder %s18, 1
      %s167 = scalar_select %p166, %s18, 1
      %p168 = scmp.lt.s32.totalorder %s165, 31
      %s169 = scalar_select %p168, %s165, 31
      %p170 = scmp.lt.s32.totalorder %s19, 0
      %s171 = scalar_select %p170, %s19, 0
      %s172 = sadd.s32 %s171, %s169
      %s173 = smul.addr %s167, 32
      %s174 = sadd.s32 %s172, %s173
      %s175 = smul.addr %s174, 8
      %s176 = scalar_lea.vmem %s2, %s175
      %p177 = scmp.lt.s32.totalorder %s18, 1
      %s178 = scalar_select %p177, %s18, 1
      %s179 = smul.addr %s178, 54
      %s180 = smul.addr %s179, 8
      %s181 = scalar_lea.vmem %s0, %s180
      %p182 = scmp.lt.s32.totalorder %s19, 0
      %s183 = scalar_select %p182, %s19, 0
      %s184 = smul.addr %s183, 8
      %s185 = scalar_lea.vmem %s1, %s184
      %s186 = smul.u32 32, %s20
      %p187 = scmp.lt.s32.totalorder %s18, 1
      %s188 = scalar_select %p187, %s18, 1
      %p189 = scmp.lt.s32.totalorder %s186, 31
      %s190 = scalar_select %p189, %s186, 31
      %p191 = scmp.lt.s32.totalorder %s19, 0
      %s192 = scalar_select %p191, %s19, 0
      %s193 = sadd.s32 %s192, %s190
      %s194 = smul.addr %s188, 32
      %s195 = sadd.s32 %s193, %s194
      %s196 = smul.addr %s195, 8
      %s197 = scalar_lea.vmem %s2, %s196
      %s198 = smul.u32 32, %s20
      %s199 = smul.u32 %s20, 16
      %s200 = smul.u32 %s199, 24
      %s201 = scalar_lea.vmem %s181, %s200
      %v202 = vld [vmem:[%s201] sm:$0xff]
      %v203 = vld [vmem:[%s201 + $0x8] sm:$0xff]
      %v204 = vld [vmem:[%s201 + $0x18] sm:$0xff]
      %v205 = vld [vmem:[%s201 + $0x20] sm:$0xff]
      %v206 = vld [vmem:[%s201 + $0x30] sm:$0xff]
      %v207 = vld [vmem:[%s201 + $0x38] sm:$0xff]
      %v208 = vld [vmem:[%s201 + $0x48] sm:$0xff]
      %v209 = vld [vmem:[%s201 + $0x50] sm:$0xff]
      %v210 = vld [vmem:[%s201 + $0x60] sm:$0xff]
      %v211 = vld [vmem:[%s201 + $0x68] sm:$0xff]
      %v212 = vld [vmem:[%s201 + $0x78] sm:$0xff]
      %v213 = vld [vmem:[%s201 + $0x80] sm:$0xff]
      %v214 = vld [vmem:[%s201 + $0x90] sm:$0xff]
      %v215 = vld [vmem:[%s201 + $0x98] sm:$0xff]
      %v216 = vld [vmem:[%s201 + $0xa8] sm:$0xff]
      %v217 = vld [vmem:[%s201 + $0xb0] sm:$0xff]
      %v218 = vld [vmem:[%s201 + $0xc0] sm:$0xff]
      %v219 = vld [vmem:[%s201 + $0xc8] sm:$0xff]
      %v220 = vld [vmem:[%s201 + $0xd8] sm:$0xff]
      %v221 = vld [vmem:[%s201 + $0xe0] sm:$0xff]
      %v222 = vld [vmem:[%s201 + $0xf0] sm:$0xff]
      %v223 = vld [vmem:[%s201 + $0xf8] sm:$0xff]
      %v224 = vld [vmem:[%s201 + $0x108] sm:$0xff]
      %v225 = vld [vmem:[%s201 + $0x110] sm:$0xff]
      %v226 = vld [vmem:[%s201 + $0x120] sm:$0xff]
      %v227 = vld [vmem:[%s201 + $0x128] sm:$0xff]
      %v228 = vld [vmem:[%s201 + $0x138] sm:$0xff]
      %v229 = vld [vmem:[%s201 + $0x140] sm:$0xff]
      %v230 = vld [vmem:[%s201 + $0x150] sm:$0xff]
      %v231 = vld [vmem:[%s201 + $0x158] sm:$0xff]
      %v232 = vld [vmem:[%s201 + $0x168] sm:$0xff]
      %v233 = vld [vmem:[%s201 + $0x170] sm:$0xff]
      %v234 = vld [vmem:[%s201 + $0x1] sm:$0xff]
      %v235 = vld [vmem:[%s201 + $0x9] sm:$0xff]
      %v236 = vld [vmem:[%s201 + $0x19] sm:$0xff]
      %v237 = vld [vmem:[%s201 + $0x21] sm:$0xff]
      %v238 = vld [vmem:[%s201 + $0x31] sm:$0xff]
      %v239 = vld [vmem:[%s201 + $0x39] sm:$0xff]
      %v240 = vld [vmem:[%s201 + $0x49] sm:$0xff]
      %v241 = vld [vmem:[%s201 + $0x51] sm:$0xff]
      %v242 = vld [vmem:[%s201 + $0x61] sm:$0xff]
      %v243 = vld [vmem:[%s201 + $0x69] sm:$0xff]
      %v244 = vld [vmem:[%s201 + $0x79] sm:$0xff]
      %v245 = vld [vmem:[%s201 + $0x81] sm:$0xff]
      %v246 = vld [vmem:[%s201 + $0x91] sm:$0xff]
      %v247 = vld [vmem:[%s201 + $0x99] sm:$0xff]
      %v248 = vld [vmem:[%s201 + $0xa9] sm:$0xff]
      %v249 = vld [vmem:[%s201 + $0xb1] sm:$0xff]
      %v250 = vld [vmem:[%s201 + $0xc1] sm:$0xff]
      %v251 = vld [vmem:[%s201 + $0xc9] sm:$0xff]
      %v252 = vld [vmem:[%s201 + $0xd9] sm:$0xff]
      %v253 = vld [vmem:[%s201 + $0xe1] sm:$0xff]
      %v254 = vld [vmem:[%s201 + $0xf1] sm:$0xff]
      %v255 = vld [vmem:[%s201 + $0xf9] sm:$0xff]
      %v256 = vld [vmem:[%s201 + $0x109] sm:$0xff]
      %v257 = vld [vmem:[%s201 + $0x111] sm:$0xff]
      %v258 = vld [vmem:[%s201 + $0x121] sm:$0xff]
      %v259 = vld [vmem:[%s201 + $0x129] sm:$0xff]
      %v260 = vld [vmem:[%s201 + $0x139] sm:$0xff]
      %v261 = vld [vmem:[%s201 + $0x141] sm:$0xff]
      %v262 = vld [vmem:[%s201 + $0x151] sm:$0xff]
      %v263 = vld [vmem:[%s201 + $0x159] sm:$0xff]
      %v264 = vld [vmem:[%s201 + $0x169] sm:$0xff]
      %v265 = vld [vmem:[%s201 + $0x171] sm:$0xff]
      %v266 = vld [vmem:[%s201 + $0x2] sm:$0xff]
      %v267 = vld [vmem:[%s201 + $0xa] sm:$0xff]
      %v268 = vld [vmem:[%s201 + $0x1a] sm:$0xff]
      %v269 = vld [vmem:[%s201 + $0x22] sm:$0xff]
      %v270 = vld [vmem:[%s201 + $0x32] sm:$0xff]
      %v271 = vld [vmem:[%s201 + $0x3a] sm:$0xff]
      %v272 = vld [vmem:[%s201 + $0x4a] sm:$0xff]
      %v273 = vld [vmem:[%s201 + $0x52] sm:$0xff]
      %v274 = vld [vmem:[%s201 + $0x62] sm:$0xff]
      %v275 = vld [vmem:[%s201 + $0x6a] sm:$0xff]
      %v276 = vld [vmem:[%s201 + $0x7a] sm:$0xff]
      %v277 = vld [vmem:[%s201 + $0x82] sm:$0xff]
      %v278 = vld [vmem:[%s201 + $0x92] sm:$0xff]
      %v279 = vld [vmem:[%s201 + $0x9a] sm:$0xff]
      %v280 = vld [vmem:[%s201 + $0xaa] sm:$0xff]
      %v281 = vld [vmem:[%s201 + $0xb2] sm:$0xff]
      %v282 = vld [vmem:[%s201 + $0xc2] sm:$0xff]
      %v283 = vld [vmem:[%s201 + $0xca] sm:$0xff]
      %v284 = vld [vmem:[%s201 + $0xda] sm:$0xff]
      %v285 = vld [vmem:[%s201 + $0xe2] sm:$0xff]
      %v286 = vld [vmem:[%s201 + $0xf2] sm:$0xff]
      %v287 = vld [vmem:[%s201 + $0xfa] sm:$0xff]
      %v288 = vld [vmem:[%s201 + $0x10a] sm:$0xff]
      %v289 = vld [vmem:[%s201 + $0x112] sm:$0xff]
      %v290 = vld [vmem:[%s201 + $0x122] sm:$0xff]
      %v291 = vld [vmem:[%s201 + $0x12a] sm:$0xff]
      %v292 = vld [vmem:[%s201 + $0x13a] sm:$0xff]
      %v293 = vld [vmem:[%s201 + $0x142] sm:$0xff]
      %v294 = vld [vmem:[%s201 + $0x152] sm:$0xff]
      %v295 = vld [vmem:[%s201 + $0x15a] sm:$0xff]
      %v296 = vld [vmem:[%s201 + $0x16a] sm:$0xff]
      %v297 = vld [vmem:[%s201 + $0x172] sm:$0xff]
      %s298 = sadd.s32 %s199, 1
      %s299 = smul.u32 %s298, 24
      %s300 = scalar_lea.vmem %s181, %s299
      %v301 = vld [vmem:[%s300] sm:$0xff]
      %v302 = vld [vmem:[%s300 + $0x8] sm:$0xff]
      %v303 = vld [vmem:[%s300 + $0x18] sm:$0xff]
      %v304 = vld [vmem:[%s300 + $0x20] sm:$0xff]
      %v305 = vld [vmem:[%s300 + $0x30] sm:$0xff]
      %v306 = vld [vmem:[%s300 + $0x38] sm:$0xff]
      %v307 = vld [vmem:[%s300 + $0x48] sm:$0xff]
      %v308 = vld [vmem:[%s300 + $0x50] sm:$0xff]
      %v309 = vld [vmem:[%s300 + $0x60] sm:$0xff]
      %v310 = vld [vmem:[%s300 + $0x68] sm:$0xff]
      %v311 = vld [vmem:[%s300 + $0x78] sm:$0xff]
      %v312 = vld [vmem:[%s300 + $0x80] sm:$0xff]
      %v313 = vld [vmem:[%s300 + $0x90] sm:$0xff]
      %v314 = vld [vmem:[%s300 + $0x98] sm:$0xff]
      %v315 = vld [vmem:[%s300 + $0xa8] sm:$0xff]
      %v316 = vld [vmem:[%s300 + $0xb0] sm:$0xff]
      %v317 = vld [vmem:[%s300 + $0xc0] sm:$0xff]
      %v318 = vld [vmem:[%s300 + $0xc8] sm:$0xff]
      %v319 = vld [vmem:[%s300 + $0xd8] sm:$0xff]
      %v320 = vld [vmem:[%s300 + $0xe0] sm:$0xff]
      %v321 = vld [vmem:[%s300 + $0xf0] sm:$0xff]
      %v322 = vld [vmem:[%s300 + $0xf8] sm:$0xff]
      %v323 = vld [vmem:[%s300 + $0x108] sm:$0xff]
      %v324 = vld [vmem:[%s300 + $0x110] sm:$0xff]
      %v325 = vld [vmem:[%s300 + $0x120] sm:$0xff]
      %v326 = vld [vmem:[%s300 + $0x128] sm:$0xff]
      %v327 = vld [vmem:[%s300 + $0x138] sm:$0xff]
      %v328 = vld [vmem:[%s300 + $0x140] sm:$0xff]
      %v329 = vld [vmem:[%s300 + $0x150] sm:$0xff]
      %v330 = vld [vmem:[%s300 + $0x158] sm:$0xff]
      %v331 = vld [vmem:[%s300 + $0x168] sm:$0xff]
      %v332 = vld [vmem:[%s300 + $0x170] sm:$0xff]
      %v333 = vld [vmem:[%s300 + $0x1] sm:$0xff]
      %v334 = vld [vmem:[%s300 + $0x9] sm:$0xff]
      %v335 = vld [vmem:[%s300 + $0x19] sm:$0xff]
      %v336 = vld [vmem:[%s300 + $0x21] sm:$0xff]
      %v337 = vld [vmem:[%s300 + $0x31] sm:$0xff]
      %v338 = vld [vmem:[%s300 + $0x39] sm:$0xff]
      %v339 = vld [vmem:[%s300 + $0x49] sm:$0xff]
      %v340 = vld [vmem:[%s300 + $0x51] sm:$0xff]
      %v341 = vld [vmem:[%s300 + $0x61] sm:$0xff]
      %v342 = vld [vmem:[%s300 + $0x69] sm:$0xff]
      %v343 = vld [vmem:[%s300 + $0x79] sm:$0xff]
      %v344 = vld [vmem:[%s300 + $0x81] sm:$0xff]
      %v345 = vld [vmem:[%s300 + $0x91] sm:$0xff]
      %v346 = vld [vmem:[%s300 + $0x99] sm:$0xff]
      %v347 = vld [vmem:[%s300 + $0xa9] sm:$0xff]
      %v348 = vld [vmem:[%s300 + $0xb1] sm:$0xff]
      %v349 = vld [vmem:[%s300 + $0xc1] sm:$0xff]
      %v350 = vld [vmem:[%s300 + $0xc9] sm:$0xff]
      %v351 = vld [vmem:[%s300 + $0xd9] sm:$0xff]
      %v352 = vld [vmem:[%s300 + $0xe1] sm:$0xff]
      %v353 = vld [vmem:[%s300 + $0xf1] sm:$0xff]
      %v354 = vld [vmem:[%s300 + $0xf9] sm:$0xff]
      %v355 = vld [vmem:[%s300 + $0x109] sm:$0xff]
      %v356 = vld [vmem:[%s300 + $0x111] sm:$0xff]
      %v357 = vld [vmem:[%s300 + $0x121] sm:$0xff]
      %v358 = vld [vmem:[%s300 + $0x129] sm:$0xff]
      %v359 = vld [vmem:[%s300 + $0x139] sm:$0xff]
      %v360 = vld [vmem:[%s300 + $0x141] sm:$0xff]
      %v361 = vld [vmem:[%s300 + $0x151] sm:$0xff]
      %v362 = vld [vmem:[%s300 + $0x159] sm:$0xff]
      %v363 = vld [vmem:[%s300 + $0x169] sm:$0xff]
      %v364 = vld [vmem:[%s300 + $0x171] sm:$0xff]
      %v365 = vld [vmem:[%s300 + $0x2] sm:$0xff]
      %v366 = vld [vmem:[%s300 + $0xa] sm:$0xff]
      %v367 = vld [vmem:[%s300 + $0x1a] sm:$0xff]
      %v368 = vld [vmem:[%s300 + $0x22] sm:$0xff]
      %v369 = vld [vmem:[%s300 + $0x32] sm:$0xff]
      %v370 = vld [vmem:[%s300 + $0x3a] sm:$0xff]
      %v371 = vld [vmem:[%s300 + $0x4a] sm:$0xff]
      %v372 = vld [vmem:[%s300 + $0x52] sm:$0xff]
      %v373 = vld [vmem:[%s300 + $0x62] sm:$0xff]
      %v374 = vld [vmem:[%s300 + $0x6a] sm:$0xff]
      %v375 = vld [vmem:[%s300 + $0x7a] sm:$0xff]
      %v376 = vld [vmem:[%s300 + $0x82] sm:$0xff]
      %v377 = vld [vmem:[%s300 + $0x92] sm:$0xff]
      %v378 = vld [vmem:[%s300 + $0x9a] sm:$0xff]
      %v379 = vld [vmem:[%s300 + $0xaa] sm:$0xff]
      %v380 = vld [vmem:[%s300 + $0xb2] sm:$0xff]
      %v381 = vld [vmem:[%s300 + $0xc2] sm:$0xff]
      %v382 = vld [vmem:[%s300 + $0xca] sm:$0xff]
      %v383 = vld [vmem:[%s300 + $0xda] sm:$0xff]
      %v384 = vld [vmem:[%s300 + $0xe2] sm:$0xff]
      %v385 = vld [vmem:[%s300 + $0xf2] sm:$0xff]
      %v386 = vld [vmem:[%s300 + $0xfa] sm:$0xff]
      %v387 = vld [vmem:[%s300 + $0x10a] sm:$0xff]
      %v388 = vld [vmem:[%s300 + $0x112] sm:$0xff]
      %v389 = vld [vmem:[%s300 + $0x122] sm:$0xff]
      %v390 = vld [vmem:[%s300 + $0x12a] sm:$0xff]
      %v391 = vld [vmem:[%s300 + $0x13a] sm:$0xff]
      %v392 = vld [vmem:[%s300 + $0x142] sm:$0xff]
      %v393 = vld [vmem:[%s300 + $0x152] sm:$0xff]
      %v394 = vld [vmem:[%s300 + $0x15a] sm:$0xff]
      %v395 = vld [vmem:[%s300 + $0x16a] sm:$0xff]
      %v396 = vld [vmem:[%s300 + $0x172] sm:$0xff]
      %s397 = sadd.s32 %s199, 2
      %s398 = smul.u32 %s397, 24
      %s399 = scalar_lea.vmem %s181, %s398
      %v400 = vld [vmem:[%s399] sm:$0xff]
      %v401 = vld [vmem:[%s399 + $0x8] sm:$0xff]
      %v402 = vld [vmem:[%s399 + $0x18] sm:$0xff]
      %v403 = vld [vmem:[%s399 + $0x20] sm:$0xff]
      %v404 = vld [vmem:[%s399 + $0x30] sm:$0xff]
      %v405 = vld [vmem:[%s399 + $0x38] sm:$0xff]
      %v406 = vld [vmem:[%s399 + $0x48] sm:$0xff]
      %v407 = vld [vmem:[%s399 + $0x50] sm:$0xff]
      %v408 = vld [vmem:[%s399 + $0x60] sm:$0xff]
      %v409 = vld [vmem:[%s399 + $0x68] sm:$0xff]
      %v410 = vld [vmem:[%s399 + $0x78] sm:$0xff]
      %v411 = vld [vmem:[%s399 + $0x80] sm:$0xff]
      %v412 = vld [vmem:[%s399 + $0x90] sm:$0xff]
      %v413 = vld [vmem:[%s399 + $0x98] sm:$0xff]
      %v414 = vld [vmem:[%s399 + $0xa8] sm:$0xff]
      %v415 = vld [vmem:[%s399 + $0xb0] sm:$0xff]
      %v416 = vld [vmem:[%s399 + $0xc0] sm:$0xff]
      %v417 = vld [vmem:[%s399 + $0xc8] sm:$0xff]
      %v418 = vld [vmem:[%s399 + $0xd8] sm:$0xff]
      %v419 = vld [vmem:[%s399 + $0xe0] sm:$0xff]
      %v420 = vld [vmem:[%s399 + $0xf0] sm:$0xff]
      %v421 = vld [vmem:[%s399 + $0xf8] sm:$0xff]
      %v422 = vld [vmem:[%s399 + $0x108] sm:$0xff]
      %v423 = vld [vmem:[%s399 + $0x110] sm:$0xff]
      %v424 = vld [vmem:[%s399 + $0x120] sm:$0xff]
      %v425 = vld [vmem:[%s399 + $0x128] sm:$0xff]
      %v426 = vld [vmem:[%s399 + $0x138] sm:$0xff]
      %v427 = vld [vmem:[%s399 + $0x140] sm:$0xff]
      %v428 = vld [vmem:[%s399 + $0x150] sm:$0xff]
      %v429 = vld [vmem:[%s399 + $0x158] sm:$0xff]
      %v430 = vld [vmem:[%s399 + $0x168] sm:$0xff]
      %v431 = vld [vmem:[%s399 + $0x170] sm:$0xff]
      %v432 = vld [vmem:[%s399 + $0x1] sm:$0xff]
      %v433 = vld [vmem:[%s399 + $0x9] sm:$0xff]
      %v434 = vld [vmem:[%s399 + $0x19] sm:$0xff]
      %v435 = vld [vmem:[%s399 + $0x21] sm:$0xff]
      %v436 = vld [vmem:[%s399 + $0x31] sm:$0xff]
      %v437 = vld [vmem:[%s399 + $0x39] sm:$0xff]
      %v438 = vld [vmem:[%s399 + $0x49] sm:$0xff]
      %v439 = vld [vmem:[%s399 + $0x51] sm:$0xff]
      %v440 = vld [vmem:[%s399 + $0x61] sm:$0xff]
      %v441 = vld [vmem:[%s399 + $0x69] sm:$0xff]
      %v442 = vld [vmem:[%s399 + $0x79] sm:$0xff]
      %v443 = vld [vmem:[%s399 + $0x81] sm:$0xff]
      %v444 = vld [vmem:[%s399 + $0x91] sm:$0xff]
      %v445 = vld [vmem:[%s399 + $0x99] sm:$0xff]
      %v446 = vld [vmem:[%s399 + $0xa9] sm:$0xff]
      %v447 = vld [vmem:[%s399 + $0xb1] sm:$0xff]
      %v448 = vld [vmem:[%s399 + $0xc1] sm:$0xff]
      %v449 = vld [vmem:[%s399 + $0xc9] sm:$0xff]
      %v450 = vld [vmem:[%s399 + $0xd9] sm:$0xff]
      %v451 = vld [vmem:[%s399 + $0xe1] sm:$0xff]
      %v452 = vld [vmem:[%s399 + $0xf1] sm:$0xff]
      %v453 = vld [vmem:[%s399 + $0xf9] sm:$0xff]
      %v454 = vld [vmem:[%s399 + $0x109] sm:$0xff]
      %v455 = vld [vmem:[%s399 + $0x111] sm:$0xff]
      %v456 = vld [vmem:[%s399 + $0x121] sm:$0xff]
      %v457 = vld [vmem:[%s399 + $0x129] sm:$0xff]
      %v458 = vld [vmem:[%s399 + $0x139] sm:$0xff]
      %v459 = vld [vmem:[%s399 + $0x141] sm:$0xff]
      %v460 = vld [vmem:[%s399 + $0x151] sm:$0xff]
      %v461 = vld [vmem:[%s399 + $0x159] sm:$0xff]
      %v462 = vld [vmem:[%s399 + $0x169] sm:$0xff]
      %v463 = vld [vmem:[%s399 + $0x171] sm:$0xff]
      %v464 = vld [vmem:[%s399 + $0x2] sm:$0xff]
      %v465 = vld [vmem:[%s399 + $0xa] sm:$0xff]
      %v466 = vld [vmem:[%s399 + $0x1a] sm:$0xff]
      %v467 = vld [vmem:[%s399 + $0x22] sm:$0xff]
      %v468 = vld [vmem:[%s399 + $0x32] sm:$0xff]
      %v469 = vld [vmem:[%s399 + $0x3a] sm:$0xff]
      %v470 = vld [vmem:[%s399 + $0x4a] sm:$0xff]
      %v471 = vld [vmem:[%s399 + $0x52] sm:$0xff]
      %v472 = vld [vmem:[%s399 + $0x62] sm:$0xff]
      %v473 = vld [vmem:[%s399 + $0x6a] sm:$0xff]
      %v474 = vld [vmem:[%s399 + $0x7a] sm:$0xff]
      %v475 = vld [vmem:[%s399 + $0x82] sm:$0xff]
      %v476 = vld [vmem:[%s399 + $0x92] sm:$0xff]
      %v477 = vld [vmem:[%s399 + $0x9a] sm:$0xff]
      %v478 = vld [vmem:[%s399 + $0xaa] sm:$0xff]
      %v479 = vld [vmem:[%s399 + $0xb2] sm:$0xff]
      %v480 = vld [vmem:[%s399 + $0xc2] sm:$0xff]
      %v481 = vld [vmem:[%s399 + $0xca] sm:$0xff]
      %v482 = vld [vmem:[%s399 + $0xda] sm:$0xff]
      %v483 = vld [vmem:[%s399 + $0xe2] sm:$0xff]
      %v484 = vld [vmem:[%s399 + $0xf2] sm:$0xff]
      %v485 = vld [vmem:[%s399 + $0xfa] sm:$0xff]
      %v486 = vld [vmem:[%s399 + $0x10a] sm:$0xff]
      %v487 = vld [vmem:[%s399 + $0x112] sm:$0xff]
      %v488 = vld [vmem:[%s399 + $0x122] sm:$0xff]
      %v489 = vld [vmem:[%s399 + $0x12a] sm:$0xff]
      %v490 = vld [vmem:[%s399 + $0x13a] sm:$0xff]
      %v491 = vld [vmem:[%s399 + $0x142] sm:$0xff]
      %v492 = vld [vmem:[%s399 + $0x152] sm:$0xff]
      %v493 = vld [vmem:[%s399 + $0x15a] sm:$0xff]
      %v494 = vld [vmem:[%s399 + $0x16a] sm:$0xff]
      %v495 = vld [vmem:[%s399 + $0x172] sm:$0xff]
      %528 = vrot.lane.b32.xlu0 %v234, 4
      %v529 = vpop.permute.xlu0 %528
      %530 = vrot.lane.b32.xlu0 %v235, 4
      %v531 = vpop.permute.xlu0 %530
      %532 = vrot.lane.b32.xlu0 %v236, 4
      %v533 = vpop.permute.xlu0 %532
      %534 = vrot.lane.b32.xlu0 %v237, 4
      %v535 = vpop.permute.xlu0 %534
      %536 = vrot.lane.b32.xlu0 %v238, 4
      %v537 = vpop.permute.xlu0 %536
      %538 = vrot.lane.b32.xlu0 %v239, 4
      %v539 = vpop.permute.xlu0 %538
      %540 = vrot.lane.b32.xlu0 %v240, 4
      %v541 = vpop.permute.xlu0 %540
      %542 = vrot.lane.b32.xlu0 %v241, 4
      %v543 = vpop.permute.xlu0 %542
      %544 = vrot.lane.b32.xlu0 %v242, 4
      %v545 = vpop.permute.xlu0 %544
      %546 = vrot.lane.b32.xlu0 %v243, 4
      %v547 = vpop.permute.xlu0 %546
      %548 = vrot.lane.b32.xlu0 %v244, 4
      %v549 = vpop.permute.xlu0 %548
      %550 = vrot.lane.b32.xlu0 %v245, 4
      %v551 = vpop.permute.xlu0 %550
      %552 = vrot.lane.b32.xlu0 %v246, 4
      %v553 = vpop.permute.xlu0 %552
      %554 = vrot.lane.b32.xlu0 %v247, 4
      %v555 = vpop.permute.xlu0 %554
      %556 = vrot.lane.b32.xlu0 %v248, 4
      %v557 = vpop.permute.xlu0 %556
      %558 = vrot.lane.b32.xlu0 %v249, 4
      %v559 = vpop.permute.xlu0 %558
      %560 = vrot.lane.b32.xlu0 %v250, 4
      %v561 = vpop.permute.xlu0 %560
      %562 = vrot.lane.b32.xlu0 %v251, 4
      %v563 = vpop.permute.xlu0 %562
      %564 = vrot.lane.b32.xlu0 %v252, 4
      %v565 = vpop.permute.xlu0 %564
      %566 = vrot.lane.b32.xlu0 %v253, 4
      %v567 = vpop.permute.xlu0 %566
      %568 = vrot.lane.b32.xlu0 %v254, 4
      %v569 = vpop.permute.xlu0 %568
      %570 = vrot.lane.b32.xlu0 %v255, 4
      %v571 = vpop.permute.xlu0 %570
      %572 = vrot.lane.b32.xlu0 %v256, 4
      %v573 = vpop.permute.xlu0 %572
      %574 = vrot.lane.b32.xlu0 %v257, 4
      %v575 = vpop.permute.xlu0 %574
      %576 = vrot.lane.b32.xlu0 %v258, 4
      %v577 = vpop.permute.xlu0 %576
      %578 = vrot.lane.b32.xlu0 %v259, 4
      %v579 = vpop.permute.xlu0 %578
      %580 = vrot.lane.b32.xlu0 %v260, 4
      %v581 = vpop.permute.xlu0 %580
      %582 = vrot.lane.b32.xlu0 %v261, 4
      %v583 = vpop.permute.xlu0 %582
      %584 = vrot.lane.b32.xlu0 %v262, 4
      %v585 = vpop.permute.xlu0 %584
      %586 = vrot.lane.b32.xlu0 %v263, 4
      %v587 = vpop.permute.xlu0 %586
      %588 = vrot.lane.b32.xlu0 %v264, 4
      %v589 = vpop.permute.xlu0 %588
      %590 = vrot.lane.b32.xlu0 %v265, 4
      %v591 = vpop.permute.xlu0 %590
      %656 = vrot.lane.b32.xlu0 %v266, 8
      %v657 = vpop.permute.xlu0 %656
      %658 = vrot.lane.b32.xlu0 %v267, 8
      %v659 = vpop.permute.xlu0 %658
      %660 = vrot.lane.b32.xlu0 %v268, 8
      %v661 = vpop.permute.xlu0 %660
      %662 = vrot.lane.b32.xlu0 %v269, 8
      %v663 = vpop.permute.xlu0 %662
      %664 = vrot.lane.b32.xlu0 %v270, 8
      %v665 = vpop.permute.xlu0 %664
      %666 = vrot.lane.b32.xlu0 %v271, 8
      %v667 = vpop.permute.xlu0 %666
      %668 = vrot.lane.b32.xlu0 %v272, 8
      %v669 = vpop.permute.xlu0 %668
      %670 = vrot.lane.b32.xlu0 %v273, 8
      %v671 = vpop.permute.xlu0 %670
      %672 = vrot.lane.b32.xlu0 %v274, 8
      %v673 = vpop.permute.xlu0 %672
      %674 = vrot.lane.b32.xlu0 %v275, 8
      %v675 = vpop.permute.xlu0 %674
      %676 = vrot.lane.b32.xlu0 %v276, 8
      %v677 = vpop.permute.xlu0 %676
      %678 = vrot.lane.b32.xlu0 %v277, 8
      %v679 = vpop.permute.xlu0 %678
      %680 = vrot.lane.b32.xlu0 %v278, 8
      %v681 = vpop.permute.xlu0 %680
      %682 = vrot.lane.b32.xlu0 %v279, 8
      %v683 = vpop.permute.xlu0 %682
      %684 = vrot.lane.b32.xlu0 %v280, 8
      %v685 = vpop.permute.xlu0 %684
      %686 = vrot.lane.b32.xlu0 %v281, 8
      %v687 = vpop.permute.xlu0 %686
      %688 = vrot.lane.b32.xlu0 %v282, 8
      %v689 = vpop.permute.xlu0 %688
      %690 = vrot.lane.b32.xlu0 %v283, 8
      %v691 = vpop.permute.xlu0 %690
      %692 = vrot.lane.b32.xlu0 %v284, 8
      %v693 = vpop.permute.xlu0 %692
      %694 = vrot.lane.b32.xlu0 %v285, 8
      %v695 = vpop.permute.xlu0 %694
      %696 = vrot.lane.b32.xlu0 %v286, 8
      %v697 = vpop.permute.xlu0 %696
      %698 = vrot.lane.b32.xlu0 %v287, 8
      %v699 = vpop.permute.xlu0 %698
      %700 = vrot.lane.b32.xlu0 %v288, 8
      %v701 = vpop.permute.xlu0 %700
      %702 = vrot.lane.b32.xlu0 %v289, 8
      %v703 = vpop.permute.xlu0 %702
      %704 = vrot.lane.b32.xlu0 %v290, 8
      %v705 = vpop.permute.xlu0 %704
      %706 = vrot.lane.b32.xlu0 %v291, 8
      %v707 = vpop.permute.xlu0 %706
      %708 = vrot.lane.b32.xlu0 %v292, 8
      %v709 = vpop.permute.xlu0 %708
      %710 = vrot.lane.b32.xlu0 %v293, 8
      %v711 = vpop.permute.xlu0 %710
      %712 = vrot.lane.b32.xlu0 %v294, 8
      %v713 = vpop.permute.xlu0 %712
      %714 = vrot.lane.b32.xlu0 %v295, 8
      %v715 = vpop.permute.xlu0 %714
      %716 = vrot.lane.b32.xlu0 %v296, 8
      %v717 = vpop.permute.xlu0 %716
      %718 = vrot.lane.b32.xlu0 %v297, 8
      %v719 = vpop.permute.xlu0 %718
      %784 = vrot.lane.b32.xlu0 %v301, 12
      %v785 = vpop.permute.xlu0 %784
      %786 = vrot.lane.b32.xlu0 %v302, 12
      %v787 = vpop.permute.xlu0 %786
      %788 = vrot.lane.b32.xlu0 %v303, 12
      %v789 = vpop.permute.xlu0 %788
      %790 = vrot.lane.b32.xlu0 %v304, 12
      %v791 = vpop.permute.xlu0 %790
      %792 = vrot.lane.b32.xlu0 %v305, 12
      %v793 = vpop.permute.xlu0 %792
      %794 = vrot.lane.b32.xlu0 %v306, 12
      %v795 = vpop.permute.xlu0 %794
      %796 = vrot.lane.b32.xlu0 %v307, 12
      %v797 = vpop.permute.xlu0 %796
      %798 = vrot.lane.b32.xlu0 %v308, 12
      %v799 = vpop.permute.xlu0 %798
      %800 = vrot.lane.b32.xlu0 %v309, 12
      %v801 = vpop.permute.xlu0 %800
      %802 = vrot.lane.b32.xlu0 %v310, 12
      %v803 = vpop.permute.xlu0 %802
      %804 = vrot.lane.b32.xlu0 %v311, 12
      %v805 = vpop.permute.xlu0 %804
      %806 = vrot.lane.b32.xlu0 %v312, 12
      %v807 = vpop.permute.xlu0 %806
      %808 = vrot.lane.b32.xlu0 %v313, 12
      %v809 = vpop.permute.xlu0 %808
      %810 = vrot.lane.b32.xlu0 %v314, 12
      %v811 = vpop.permute.xlu0 %810
      %812 = vrot.lane.b32.xlu0 %v315, 12
      %v813 = vpop.permute.xlu0 %812
      %814 = vrot.lane.b32.xlu0 %v316, 12
      %v815 = vpop.permute.xlu0 %814
      %816 = vrot.lane.b32.xlu0 %v317, 12
      %v817 = vpop.permute.xlu0 %816
      %818 = vrot.lane.b32.xlu0 %v318, 12
      %v819 = vpop.permute.xlu0 %818
      %820 = vrot.lane.b32.xlu0 %v319, 12
      %v821 = vpop.permute.xlu0 %820
      %822 = vrot.lane.b32.xlu0 %v320, 12
      %v823 = vpop.permute.xlu0 %822
      %824 = vrot.lane.b32.xlu0 %v321, 12
      %v825 = vpop.permute.xlu0 %824
      %826 = vrot.lane.b32.xlu0 %v322, 12
      %v827 = vpop.permute.xlu0 %826
      %828 = vrot.lane.b32.xlu0 %v323, 12
      %v829 = vpop.permute.xlu0 %828
      %830 = vrot.lane.b32.xlu0 %v324, 12
      %v831 = vpop.permute.xlu0 %830
      %832 = vrot.lane.b32.xlu0 %v325, 12
      %v833 = vpop.permute.xlu0 %832
      %834 = vrot.lane.b32.xlu0 %v326, 12
      %v835 = vpop.permute.xlu0 %834
      %836 = vrot.lane.b32.xlu0 %v327, 12
      %v837 = vpop.permute.xlu0 %836
      %838 = vrot.lane.b32.xlu0 %v328, 12
      %v839 = vpop.permute.xlu0 %838
      %840 = vrot.lane.b32.xlu0 %v329, 12
      %v841 = vpop.permute.xlu0 %840
      %842 = vrot.lane.b32.xlu0 %v330, 12
      %v843 = vpop.permute.xlu0 %842
      %844 = vrot.lane.b32.xlu0 %v331, 12
      %v845 = vpop.permute.xlu0 %844
      %846 = vrot.lane.b32.xlu0 %v332, 12
      %v847 = vpop.permute.xlu0 %846
      %912 = vrot.lane.b32.xlu0 %v333, 16
      %v913 = vpop.permute.xlu0 %912
      %914 = vrot.lane.b32.xlu0 %v334, 16
      %v915 = vpop.permute.xlu0 %914
      %916 = vrot.lane.b32.xlu0 %v335, 16
      %v917 = vpop.permute.xlu0 %916
      %918 = vrot.lane.b32.xlu0 %v336, 16
      %v919 = vpop.permute.xlu0 %918
      %920 = vrot.lane.b32.xlu0 %v337, 16
      %v921 = vpop.permute.xlu0 %920
      %922 = vrot.lane.b32.xlu0 %v338, 16
      %v923 = vpop.permute.xlu0 %922
      %924 = vrot.lane.b32.xlu0 %v339, 16
      %v925 = vpop.permute.xlu0 %924
      %926 = vrot.lane.b32.xlu0 %v340, 16
      %v927 = vpop.permute.xlu0 %926
      %928 = vrot.lane.b32.xlu0 %v341, 16
      %v929 = vpop.permute.xlu0 %928
      %930 = vrot.lane.b32.xlu0 %v342, 16
      %v931 = vpop.permute.xlu0 %930
      %932 = vrot.lane.b32.xlu0 %v343, 16
      %v933 = vpop.permute.xlu0 %932
      %934 = vrot.lane.b32.xlu0 %v344, 16
      %v935 = vpop.permute.xlu0 %934
      %936 = vrot.lane.b32.xlu0 %v345, 16
      %v937 = vpop.permute.xlu0 %936
      %938 = vrot.lane.b32.xlu0 %v346, 16
      %v939 = vpop.permute.xlu0 %938
      %940 = vrot.lane.b32.xlu0 %v347, 16
      %v941 = vpop.permute.xlu0 %940
      %942 = vrot.lane.b32.xlu0 %v348, 16
      %v943 = vpop.permute.xlu0 %942
      %944 = vrot.lane.b32.xlu0 %v349, 16
      %v945 = vpop.permute.xlu0 %944
      %946 = vrot.lane.b32.xlu0 %v350, 16
      %v947 = vpop.permute.xlu0 %946
      %948 = vrot.lane.b32.xlu0 %v351, 16
      %v949 = vpop.permute.xlu0 %948
      %950 = vrot.lane.b32.xlu0 %v352, 16
      %v951 = vpop.permute.xlu0 %950
      %952 = vrot.lane.b32.xlu0 %v353, 16
      %v953 = vpop.permute.xlu0 %952
      %954 = vrot.lane.b32.xlu0 %v354, 16
      %v955 = vpop.permute.xlu0 %954
      %956 = vrot.lane.b32.xlu0 %v355, 16
      %v957 = vpop.permute.xlu0 %956
      %958 = vrot.lane.b32.xlu0 %v356, 16
      %v959 = vpop.permute.xlu0 %958
      %960 = vrot.lane.b32.xlu0 %v357, 16
      %v961 = vpop.permute.xlu0 %960
      %962 = vrot.lane.b32.xlu0 %v358, 16
      %v963 = vpop.permute.xlu0 %962
      %964 = vrot.lane.b32.xlu0 %v359, 16
      %v965 = vpop.permute.xlu0 %964
      %966 = vrot.lane.b32.xlu0 %v360, 16
      %v967 = vpop.permute.xlu0 %966
      %968 = vrot.lane.b32.xlu0 %v361, 16
      %v969 = vpop.permute.xlu0 %968
      %970 = vrot.lane.b32.xlu0 %v362, 16
      %v971 = vpop.permute.xlu0 %970
      %972 = vrot.lane.b32.xlu0 %v363, 16
      %v973 = vpop.permute.xlu0 %972
      %974 = vrot.lane.b32.xlu0 %v364, 16
      %v975 = vpop.permute.xlu0 %974
      %1040 = vrot.lane.b32.xlu0 %v365, 20
      %v1041 = vpop.permute.xlu0 %1040
      %1042 = vrot.lane.b32.xlu0 %v366, 20
      %v1043 = vpop.permute.xlu0 %1042
      %1044 = vrot.lane.b32.xlu0 %v367, 20
      %v1045 = vpop.permute.xlu0 %1044
      %1046 = vrot.lane.b32.xlu0 %v368, 20
      %v1047 = vpop.permute.xlu0 %1046
      %1048 = vrot.lane.b32.xlu0 %v369, 20
      %v1049 = vpop.permute.xlu0 %1048
      %1050 = vrot.lane.b32.xlu0 %v370, 20
      %v1051 = vpop.permute.xlu0 %1050
      %1052 = vrot.lane.b32.xlu0 %v371, 20
      %v1053 = vpop.permute.xlu0 %1052
      %1054 = vrot.lane.b32.xlu0 %v372, 20
      %v1055 = vpop.permute.xlu0 %1054
      %1056 = vrot.lane.b32.xlu0 %v373, 20
      %v1057 = vpop.permute.xlu0 %1056
      %1058 = vrot.lane.b32.xlu0 %v374, 20
      %v1059 = vpop.permute.xlu0 %1058
      %1060 = vrot.lane.b32.xlu0 %v375, 20
      %v1061 = vpop.permute.xlu0 %1060
      %1062 = vrot.lane.b32.xlu0 %v376, 20
      %v1063 = vpop.permute.xlu0 %1062
      %1064 = vrot.lane.b32.xlu0 %v377, 20
      %v1065 = vpop.permute.xlu0 %1064
      %1066 = vrot.lane.b32.xlu0 %v378, 20
      %v1067 = vpop.permute.xlu0 %1066
      %1068 = vrot.lane.b32.xlu0 %v379, 20
      %v1069 = vpop.permute.xlu0 %1068
      %1070 = vrot.lane.b32.xlu0 %v380, 20
      %v1071 = vpop.permute.xlu0 %1070
      %1072 = vrot.lane.b32.xlu0 %v381, 20
      %v1073 = vpop.permute.xlu0 %1072
      %1074 = vrot.lane.b32.xlu0 %v382, 20
      %v1075 = vpop.permute.xlu0 %1074
      %1076 = vrot.lane.b32.xlu0 %v383, 20
      %v1077 = vpop.permute.xlu0 %1076
      %1078 = vrot.lane.b32.xlu0 %v384, 20
      %v1079 = vpop.permute.xlu0 %1078
      %1080 = vrot.lane.b32.xlu0 %v385, 20
      %v1081 = vpop.permute.xlu0 %1080
      %1082 = vrot.lane.b32.xlu0 %v386, 20
      %v1083 = vpop.permute.xlu0 %1082
      %1084 = vrot.lane.b32.xlu0 %v387, 20
      %v1085 = vpop.permute.xlu0 %1084
      %1086 = vrot.lane.b32.xlu0 %v388, 20
      %v1087 = vpop.permute.xlu0 %1086
      %1088 = vrot.lane.b32.xlu0 %v389, 20
      %v1089 = vpop.permute.xlu0 %1088
      %1090 = vrot.lane.b32.xlu0 %v390, 20
      %v1091 = vpop.permute.xlu0 %1090
      %1092 = vrot.lane.b32.xlu0 %v391, 20
      %v1093 = vpop.permute.xlu0 %1092
      %1094 = vrot.lane.b32.xlu0 %v392, 20
      %v1095 = vpop.permute.xlu0 %1094
      %1096 = vrot.lane.b32.xlu0 %v393, 20
      %v1097 = vpop.permute.xlu0 %1096
      %1098 = vrot.lane.b32.xlu0 %v394, 20
      %v1099 = vpop.permute.xlu0 %1098
      %1100 = vrot.lane.b32.xlu0 %v395, 20
      %v1101 = vpop.permute.xlu0 %1100
      %1102 = vrot.lane.b32.xlu0 %v396, 20
      %v1103 = vpop.permute.xlu0 %1102
      %1168 = vrot.lane.b32.xlu0 %v400, 24
      %v1169 = vpop.permute.xlu0 %1168
      %1170 = vrot.lane.b32.xlu0 %v401, 24
      %v1171 = vpop.permute.xlu0 %1170
      %1172 = vrot.lane.b32.xlu0 %v402, 24
      %v1173 = vpop.permute.xlu0 %1172
      %1174 = vrot.lane.b32.xlu0 %v403, 24
      %v1175 = vpop.permute.xlu0 %1174
      %1176 = vrot.lane.b32.xlu0 %v404, 24
      %v1177 = vpop.permute.xlu0 %1176
      %1178 = vrot.lane.b32.xlu0 %v405, 24
      %v1179 = vpop.permute.xlu0 %1178
      %1180 = vrot.lane.b32.xlu0 %v406, 24
      %v1181 = vpop.permute.xlu0 %1180
      %1182 = vrot.lane.b32.xlu0 %v407, 24
      %v1183 = vpop.permute.xlu0 %1182
      %1184 = vrot.lane.b32.xlu0 %v408, 24
      %v1185 = vpop.permute.xlu0 %1184
      %1186 = vrot.lane.b32.xlu0 %v409, 24
      %v1187 = vpop.permute.xlu0 %1186
      %1188 = vrot.lane.b32.xlu0 %v410, 24
      %v1189 = vpop.permute.xlu0 %1188
      %1190 = vrot.lane.b32.xlu0 %v411, 24
      %v1191 = vpop.permute.xlu0 %1190
      %1192 = vrot.lane.b32.xlu0 %v412, 24
      %v1193 = vpop.permute.xlu0 %1192
      %1194 = vrot.lane.b32.xlu0 %v413, 24
      %v1195 = vpop.permute.xlu0 %1194
      %1196 = vrot.lane.b32.xlu0 %v414, 24
      %v1197 = vpop.permute.xlu0 %1196
      %1198 = vrot.lane.b32.xlu0 %v415, 24
      %v1199 = vpop.permute.xlu0 %1198
      %1200 = vrot.lane.b32.xlu0 %v416, 24
      %v1201 = vpop.permute.xlu0 %1200
      %1202 = vrot.lane.b32.xlu0 %v417, 24
      %v1203 = vpop.permute.xlu0 %1202
      %1204 = vrot.lane.b32.xlu0 %v418, 24
      %v1205 = vpop.permute.xlu0 %1204
      %1206 = vrot.lane.b32.xlu0 %v419, 24
      %v1207 = vpop.permute.xlu0 %1206
      %1208 = vrot.lane.b32.xlu0 %v420, 24
      %v1209 = vpop.permute.xlu0 %1208
      %1210 = vrot.lane.b32.xlu0 %v421, 24
      %v1211 = vpop.permute.xlu0 %1210
      %1212 = vrot.lane.b32.xlu0 %v422, 24
      %v1213 = vpop.permute.xlu0 %1212
      %1214 = vrot.lane.b32.xlu0 %v423, 24
      %v1215 = vpop.permute.xlu0 %1214
      %1216 = vrot.lane.b32.xlu0 %v424, 24
      %v1217 = vpop.permute.xlu0 %1216
      %1218 = vrot.lane.b32.xlu0 %v425, 24
      %v1219 = vpop.permute.xlu0 %1218
      %1220 = vrot.lane.b32.xlu0 %v426, 24
      %v1221 = vpop.permute.xlu0 %1220
      %1222 = vrot.lane.b32.xlu0 %v427, 24
      %v1223 = vpop.permute.xlu0 %1222
      %1224 = vrot.lane.b32.xlu0 %v428, 24
      %v1225 = vpop.permute.xlu0 %1224
      %1226 = vrot.lane.b32.xlu0 %v429, 24
      %v1227 = vpop.permute.xlu0 %1226
      %1228 = vrot.lane.b32.xlu0 %v430, 24
      %v1229 = vpop.permute.xlu0 %1228
      %1230 = vrot.lane.b32.xlu0 %v431, 24
      %v1231 = vpop.permute.xlu0 %1230
      %1296 = vrot.lane.b32.xlu0 %v432, 28
      %v1297 = vpop.permute.xlu0 %1296
      %1298 = vrot.lane.b32.xlu0 %v433, 28
      %v1299 = vpop.permute.xlu0 %1298
      %1300 = vrot.lane.b32.xlu0 %v434, 28
      %v1301 = vpop.permute.xlu0 %1300
      %1302 = vrot.lane.b32.xlu0 %v435, 28
      %v1303 = vpop.permute.xlu0 %1302
      %1304 = vrot.lane.b32.xlu0 %v436, 28
      %v1305 = vpop.permute.xlu0 %1304
      %1306 = vrot.lane.b32.xlu0 %v437, 28
      %v1307 = vpop.permute.xlu0 %1306
      %1308 = vrot.lane.b32.xlu0 %v438, 28
      %v1309 = vpop.permute.xlu0 %1308
      %1310 = vrot.lane.b32.xlu0 %v439, 28
      %v1311 = vpop.permute.xlu0 %1310
      %1312 = vrot.lane.b32.xlu0 %v440, 28
      %v1313 = vpop.permute.xlu0 %1312
      %1314 = vrot.lane.b32.xlu0 %v441, 28
      %v1315 = vpop.permute.xlu0 %1314
      %1316 = vrot.lane.b32.xlu0 %v442, 28
      %v1317 = vpop.permute.xlu0 %1316
      %1318 = vrot.lane.b32.xlu0 %v443, 28
      %v1319 = vpop.permute.xlu0 %1318
      %1320 = vrot.lane.b32.xlu0 %v444, 28
      %v1321 = vpop.permute.xlu0 %1320
      %1322 = vrot.lane.b32.xlu0 %v445, 28
      %v1323 = vpop.permute.xlu0 %1322
      %1324 = vrot.lane.b32.xlu0 %v446, 28
      %v1325 = vpop.permute.xlu0 %1324
      %1326 = vrot.lane.b32.xlu0 %v447, 28
      %v1327 = vpop.permute.xlu0 %1326
      %1328 = vrot.lane.b32.xlu0 %v448, 28
      %v1329 = vpop.permute.xlu0 %1328
      %1330 = vrot.lane.b32.xlu0 %v449, 28
      %v1331 = vpop.permute.xlu0 %1330
      %1332 = vrot.lane.b32.xlu0 %v450, 28
      %v1333 = vpop.permute.xlu0 %1332
      %1334 = vrot.lane.b32.xlu0 %v451, 28
      %v1335 = vpop.permute.xlu0 %1334
      %1336 = vrot.lane.b32.xlu0 %v452, 28
      %v1337 = vpop.permute.xlu0 %1336
      %1338 = vrot.lane.b32.xlu0 %v453, 28
      %v1339 = vpop.permute.xlu0 %1338
      %1340 = vrot.lane.b32.xlu0 %v454, 28
      %v1341 = vpop.permute.xlu0 %1340
      %1342 = vrot.lane.b32.xlu0 %v455, 28
      %v1343 = vpop.permute.xlu0 %1342
      %1344 = vrot.lane.b32.xlu0 %v456, 28
      %v1345 = vpop.permute.xlu0 %1344
      %1346 = vrot.lane.b32.xlu0 %v457, 28
      %v1347 = vpop.permute.xlu0 %1346
      %1348 = vrot.lane.b32.xlu0 %v458, 28
      %v1349 = vpop.permute.xlu0 %1348
      %1350 = vrot.lane.b32.xlu0 %v459, 28
      %v1351 = vpop.permute.xlu0 %1350
      %1352 = vrot.lane.b32.xlu0 %v460, 28
      %v1353 = vpop.permute.xlu0 %1352
      %1354 = vrot.lane.b32.xlu0 %v461, 28
      %v1355 = vpop.permute.xlu0 %1354
      %1356 = vrot.lane.b32.xlu0 %v462, 28
      %v1357 = vpop.permute.xlu0 %1356
      %1358 = vrot.lane.b32.xlu0 %v463, 28
      %v1359 = vpop.permute.xlu0 %1358
      %1424 = vrot.lane.b32.xlu0 %v464, 32
      %v1425 = vpop.permute.xlu0 %1424
      %1426 = vrot.lane.b32.xlu0 %v465, 32
      %v1427 = vpop.permute.xlu0 %1426
      %1428 = vrot.lane.b32.xlu0 %v466, 32
      %v1429 = vpop.permute.xlu0 %1428
      %1430 = vrot.lane.b32.xlu0 %v467, 32
      %v1431 = vpop.permute.xlu0 %1430
      %1432 = vrot.lane.b32.xlu0 %v468, 32
      %v1433 = vpop.permute.xlu0 %1432
      %1434 = vrot.lane.b32.xlu0 %v469, 32
      %v1435 = vpop.permute.xlu0 %1434
      %1436 = vrot.lane.b32.xlu0 %v470, 32
      %v1437 = vpop.permute.xlu0 %1436
      %1438 = vrot.lane.b32.xlu0 %v471, 32
      %v1439 = vpop.permute.xlu0 %1438
      %1440 = vrot.lane.b32.xlu0 %v472, 32
      %v1441 = vpop.permute.xlu0 %1440
      %1442 = vrot.lane.b32.xlu0 %v473, 32
      %v1443 = vpop.permute.xlu0 %1442
      %1444 = vrot.lane.b32.xlu0 %v474, 32
      %v1445 = vpop.permute.xlu0 %1444
      %1446 = vrot.lane.b32.xlu0 %v475, 32
      %v1447 = vpop.permute.xlu0 %1446
      %1448 = vrot.lane.b32.xlu0 %v476, 32
      %v1449 = vpop.permute.xlu0 %1448
      %1450 = vrot.lane.b32.xlu0 %v477, 32
      %v1451 = vpop.permute.xlu0 %1450
      %1452 = vrot.lane.b32.xlu0 %v478, 32
      %v1453 = vpop.permute.xlu0 %1452
      %1454 = vrot.lane.b32.xlu0 %v479, 32
      %v1455 = vpop.permute.xlu0 %1454
      %1456 = vrot.lane.b32.xlu0 %v480, 32
      %v1457 = vpop.permute.xlu0 %1456
      %1458 = vrot.lane.b32.xlu0 %v481, 32
      %v1459 = vpop.permute.xlu0 %1458
      %1460 = vrot.lane.b32.xlu0 %v482, 32
      %v1461 = vpop.permute.xlu0 %1460
      %1462 = vrot.lane.b32.xlu0 %v483, 32
      %v1463 = vpop.permute.xlu0 %1462
      %1464 = vrot.lane.b32.xlu0 %v484, 32
      %v1465 = vpop.permute.xlu0 %1464
      %1466 = vrot.lane.b32.xlu0 %v485, 32
      %v1467 = vpop.permute.xlu0 %1466
      %1468 = vrot.lane.b32.xlu0 %v486, 32
      %v1469 = vpop.permute.xlu0 %1468
      %1470 = vrot.lane.b32.xlu0 %v487, 32
      %v1471 = vpop.permute.xlu0 %1470
      %1472 = vrot.lane.b32.xlu0 %v488, 32
      %v1473 = vpop.permute.xlu0 %1472
      %1474 = vrot.lane.b32.xlu0 %v489, 32
      %v1475 = vpop.permute.xlu0 %1474
      %1476 = vrot.lane.b32.xlu0 %v490, 32
      %v1477 = vpop.permute.xlu0 %1476
      %1478 = vrot.lane.b32.xlu0 %v491, 32
      %v1479 = vpop.permute.xlu0 %1478
      %1480 = vrot.lane.b32.xlu0 %v492, 32
      %v1481 = vpop.permute.xlu0 %1480
      %1482 = vrot.lane.b32.xlu0 %v493, 32
      %v1483 = vpop.permute.xlu0 %1482
      %1484 = vrot.lane.b32.xlu0 %v494, 32
      %v1485 = vpop.permute.xlu0 %1484
      %1486 = vrot.lane.b32.xlu0 %v495, 32
      %v1487 = vpop.permute.xlu0 %1486
      %vm1520 = vcmask 31744
      %v1521 = vsel %vm1520, %v202, %v529
      %v1522 = vsel %vm1520, %v203, %v531
      %v1523 = vsel %vm1520, %v204, %v533
      %v1524 = vsel %vm1520, %v205, %v535
      %v1525 = vsel %vm1520, %v206, %v537
      %v1526 = vsel %vm1520, %v207, %v539
      %v1527 = vsel %vm1520, %v208, %v541
      %v1528 = vsel %vm1520, %v209, %v543
      %v1529 = vsel %vm1520, %v210, %v545
      %v1530 = vsel %vm1520, %v211, %v547
      %v1531 = vsel %vm1520, %v212, %v549
      %v1532 = vsel %vm1520, %v213, %v551
      %v1533 = vsel %vm1520, %v214, %v553
      %v1534 = vsel %vm1520, %v215, %v555
      %v1535 = vsel %vm1520, %v216, %v557
      %v1536 = vsel %vm1520, %v217, %v559
      %v1537 = vsel %vm1520, %v218, %v561
      %v1538 = vsel %vm1520, %v219, %v563
      %v1539 = vsel %vm1520, %v220, %v565
      %v1540 = vsel %vm1520, %v221, %v567
      %v1541 = vsel %vm1520, %v222, %v569
      %v1542 = vsel %vm1520, %v223, %v571
      %v1543 = vsel %vm1520, %v224, %v573
      %v1544 = vsel %vm1520, %v225, %v575
      %v1545 = vsel %vm1520, %v226, %v577
      %v1546 = vsel %vm1520, %v227, %v579
      %v1547 = vsel %vm1520, %v228, %v581
      %v1548 = vsel %vm1520, %v229, %v583
      %v1549 = vsel %vm1520, %v230, %v585
      %v1550 = vsel %vm1520, %v231, %v587
      %v1551 = vsel %vm1520, %v232, %v589
      %v1552 = vsel %vm1520, %v233, %v591
      %vm1553 = vcmask 64512
      %v1554 = vsel %vm1553, %v1521, %v657
      %v1555 = vsel %vm1553, %v1522, %v659
      %v1556 = vsel %vm1553, %v1523, %v661
      %v1557 = vsel %vm1553, %v1524, %v663
      %v1558 = vsel %vm1553, %v1525, %v665
      %v1559 = vsel %vm1553, %v1526, %v667
      %v1560 = vsel %vm1553, %v1527, %v669
      %v1561 = vsel %vm1553, %v1528, %v671
      %v1562 = vsel %vm1553, %v1529, %v673
      %v1563 = vsel %vm1553, %v1530, %v675
      %v1564 = vsel %vm1553, %v1531, %v677
      %v1565 = vsel %vm1553, %v1532, %v679
      %v1566 = vsel %vm1553, %v1533, %v681
      %v1567 = vsel %vm1553, %v1534, %v683
      %v1568 = vsel %vm1553, %v1535, %v685
      %v1569 = vsel %vm1553, %v1536, %v687
      %v1570 = vsel %vm1553, %v1537, %v689
      %v1571 = vsel %vm1553, %v1538, %v691
      %v1572 = vsel %vm1553, %v1539, %v693
      %v1573 = vsel %vm1553, %v1540, %v695
      %v1574 = vsel %vm1553, %v1541, %v697
      %v1575 = vsel %vm1553, %v1542, %v699
      %v1576 = vsel %vm1553, %v1543, %v701
      %v1577 = vsel %vm1553, %v1544, %v703
      %v1578 = vsel %vm1553, %v1545, %v705
      %v1579 = vsel %vm1553, %v1546, %v707
      %v1580 = vsel %vm1553, %v1547, %v709
      %v1581 = vsel %vm1553, %v1548, %v711
      %v1582 = vsel %vm1553, %v1549, %v713
      %v1583 = vsel %vm1553, %v1550, %v715
      %v1584 = vsel %vm1553, %v1551, %v717
      %v1585 = vsel %vm1553, %v1552, %v719
      %vm1586 = vcmask 97280
      %v1587 = vsel %vm1586, %v1554, %v785
      %v1588 = vsel %vm1586, %v1555, %v787
      %v1589 = vsel %vm1586, %v1556, %v789
      %v1590 = vsel %vm1586, %v1557, %v791
      %v1591 = vsel %vm1586, %v1558, %v793
      %v1592 = vsel %vm1586, %v1559, %v795
      %v1593 = vsel %vm1586, %v1560, %v797
      %v1594 = vsel %vm1586, %v1561, %v799
      %v1595 = vsel %vm1586, %v1562, %v801
      %v1596 = vsel %vm1586, %v1563, %v803
      %v1597 = vsel %vm1586, %v1564, %v805
      %v1598 = vsel %vm1586, %v1565, %v807
      %v1599 = vsel %vm1586, %v1566, %v809
      %v1600 = vsel %vm1586, %v1567, %v811
      %v1601 = vsel %vm1586, %v1568, %v813
      %v1602 = vsel %vm1586, %v1569, %v815
      %v1603 = vsel %vm1586, %v1570, %v817
      %v1604 = vsel %vm1586, %v1571, %v819
      %v1605 = vsel %vm1586, %v1572, %v821
      %v1606 = vsel %vm1586, %v1573, %v823
      %v1607 = vsel %vm1586, %v1574, %v825
      %v1608 = vsel %vm1586, %v1575, %v827
      %v1609 = vsel %vm1586, %v1576, %v829
      %v1610 = vsel %vm1586, %v1577, %v831
      %v1611 = vsel %vm1586, %v1578, %v833
      %v1612 = vsel %vm1586, %v1579, %v835
      %v1613 = vsel %vm1586, %v1580, %v837
      %v1614 = vsel %vm1586, %v1581, %v839
      %v1615 = vsel %vm1586, %v1582, %v841
      %v1616 = vsel %vm1586, %v1583, %v843
      %v1617 = vsel %vm1586, %v1584, %v845
      %v1618 = vsel %vm1586, %v1585, %v847
      %vm1619 = vcmask 130048
      %v1620 = vsel %vm1619, %v1587, %v913
      %v1621 = vsel %vm1619, %v1588, %v915
      %v1622 = vsel %vm1619, %v1589, %v917
      %v1623 = vsel %vm1619, %v1590, %v919
      %v1624 = vsel %vm1619, %v1591, %v921
      %v1625 = vsel %vm1619, %v1592, %v923
      %v1626 = vsel %vm1619, %v1593, %v925
      %v1627 = vsel %vm1619, %v1594, %v927
      %v1628 = vsel %vm1619, %v1595, %v929
      %v1629 = vsel %vm1619, %v1596, %v931
      %v1630 = vsel %vm1619, %v1597, %v933
      %v1631 = vsel %vm1619, %v1598, %v935
      %v1632 = vsel %vm1619, %v1599, %v937
      %v1633 = vsel %vm1619, %v1600, %v939
      %v1634 = vsel %vm1619, %v1601, %v941
      %v1635 = vsel %vm1619, %v1602, %v943
      %v1636 = vsel %vm1619, %v1603, %v945
      %v1637 = vsel %vm1619, %v1604, %v947
      %v1638 = vsel %vm1619, %v1605, %v949
      %v1639 = vsel %vm1619, %v1606, %v951
      %v1640 = vsel %vm1619, %v1607, %v953
      %v1641 = vsel %vm1619, %v1608, %v955
      %v1642 = vsel %vm1619, %v1609, %v957
      %v1643 = vsel %vm1619, %v1610, %v959
      %v1644 = vsel %vm1619, %v1611, %v961
      %v1645 = vsel %vm1619, %v1612, %v963
      %v1646 = vsel %vm1619, %v1613, %v965
      %v1647 = vsel %vm1619, %v1614, %v967
      %v1648 = vsel %vm1619, %v1615, %v969
      %v1649 = vsel %vm1619, %v1616, %v971
      %v1650 = vsel %vm1619, %v1617, %v973
      %v1651 = vsel %vm1619, %v1618, %v975
      %vm1652 = vcmask 162816
      %v1653 = vsel %vm1652, %v1620, %v1041
      %v1654 = vsel %vm1652, %v1621, %v1043
      %v1655 = vsel %vm1652, %v1622, %v1045
      %v1656 = vsel %vm1652, %v1623, %v1047
      %v1657 = vsel %vm1652, %v1624, %v1049
      %v1658 = vsel %vm1652, %v1625, %v1051
      %v1659 = vsel %vm1652, %v1626, %v1053
      %v1660 = vsel %vm1652, %v1627, %v1055
      %v1661 = vsel %vm1652, %v1628, %v1057
      %v1662 = vsel %vm1652, %v1629, %v1059
      %v1663 = vsel %vm1652, %v1630, %v1061
      %v1664 = vsel %vm1652, %v1631, %v1063
      %v1665 = vsel %vm1652, %v1632, %v1065
      %v1666 = vsel %vm1652, %v1633, %v1067
      %v1667 = vsel %vm1652, %v1634, %v1069
      %v1668 = vsel %vm1652, %v1635, %v1071
      %v1669 = vsel %vm1652, %v1636, %v1073
      %v1670 = vsel %vm1652, %v1637, %v1075
      %v1671 = vsel %vm1652, %v1638, %v1077
      %v1672 = vsel %vm1652, %v1639, %v1079
      %v1673 = vsel %vm1652, %v1640, %v1081
      %v1674 = vsel %vm1652, %v1641, %v1083
      %v1675 = vsel %vm1652, %v1642, %v1085
      %v1676 = vsel %vm1652, %v1643, %v1087
      %v1677 = vsel %vm1652, %v1644, %v1089
      %v1678 = vsel %vm1652, %v1645, %v1091
      %v1679 = vsel %vm1652, %v1646, %v1093
      %v1680 = vsel %vm1652, %v1647, %v1095
      %v1681 = vsel %vm1652, %v1648, %v1097
      %v1682 = vsel %vm1652, %v1649, %v1099
      %v1683 = vsel %vm1652, %v1650, %v1101
      %v1684 = vsel %vm1652, %v1651, %v1103
      %vm1685 = vcmask 195584
      %v1686 = vsel %vm1685, %v1653, %v1169
      %v1687 = vsel %vm1685, %v1654, %v1171
      %v1688 = vsel %vm1685, %v1655, %v1173
      %v1689 = vsel %vm1685, %v1656, %v1175
      %v1690 = vsel %vm1685, %v1657, %v1177
      %v1691 = vsel %vm1685, %v1658, %v1179
      %v1692 = vsel %vm1685, %v1659, %v1181
      %v1693 = vsel %vm1685, %v1660, %v1183
      %v1694 = vsel %vm1685, %v1661, %v1185
      %v1695 = vsel %vm1685, %v1662, %v1187
      %v1696 = vsel %vm1685, %v1663, %v1189
      %v1697 = vsel %vm1685, %v1664, %v1191
      %v1698 = vsel %vm1685, %v1665, %v1193
      %v1699 = vsel %vm1685, %v1666, %v1195
      %v1700 = vsel %vm1685, %v1667, %v1197
      %v1701 = vsel %vm1685, %v1668, %v1199
      %v1702 = vsel %vm1685, %v1669, %v1201
      %v1703 = vsel %vm1685, %v1670, %v1203
      %v1704 = vsel %vm1685, %v1671, %v1205
      %v1705 = vsel %vm1685, %v1672, %v1207
      %v1706 = vsel %vm1685, %v1673, %v1209
      %v1707 = vsel %vm1685, %v1674, %v1211
      %v1708 = vsel %vm1685, %v1675, %v1213
      %v1709 = vsel %vm1685, %v1676, %v1215
      %v1710 = vsel %vm1685, %v1677, %v1217
      %v1711 = vsel %vm1685, %v1678, %v1219
      %v1712 = vsel %vm1685, %v1679, %v1221
      %v1713 = vsel %vm1685, %v1680, %v1223
      %v1714 = vsel %vm1685, %v1681, %v1225
      %v1715 = vsel %vm1685, %v1682, %v1227
      %v1716 = vsel %vm1685, %v1683, %v1229
      %v1717 = vsel %vm1685, %v1684, %v1231
      %vm1718 = vcmask 228352
      %v1719 = vsel %vm1718, %v1686, %v1297
      %v1720 = vsel %vm1718, %v1687, %v1299
      %v1721 = vsel %vm1718, %v1688, %v1301
      %v1722 = vsel %vm1718, %v1689, %v1303
      %v1723 = vsel %vm1718, %v1690, %v1305
      %v1724 = vsel %vm1718, %v1691, %v1307
      %v1725 = vsel %vm1718, %v1692, %v1309
      %v1726 = vsel %vm1718, %v1693, %v1311
      %v1727 = vsel %vm1718, %v1694, %v1313
      %v1728 = vsel %vm1718, %v1695, %v1315
      %v1729 = vsel %vm1718, %v1696, %v1317
      %v1730 = vsel %vm1718, %v1697, %v1319
      %v1731 = vsel %vm1718, %v1698, %v1321
      %v1732 = vsel %vm1718, %v1699, %v1323
      %v1733 = vsel %vm1718, %v1700, %v1325
      %v1734 = vsel %vm1718, %v1701, %v1327
      %v1735 = vsel %vm1718, %v1702, %v1329
      %v1736 = vsel %vm1718, %v1703, %v1331
      %v1737 = vsel %vm1718, %v1704, %v1333
      %v1738 = vsel %vm1718, %v1705, %v1335
      %v1739 = vsel %vm1718, %v1706, %v1337
      %v1740 = vsel %vm1718, %v1707, %v1339
      %v1741 = vsel %vm1718, %v1708, %v1341
      %v1742 = vsel %vm1718, %v1709, %v1343
      %v1743 = vsel %vm1718, %v1710, %v1345
      %v1744 = vsel %vm1718, %v1711, %v1347
      %v1745 = vsel %vm1718, %v1712, %v1349
      %v1746 = vsel %vm1718, %v1713, %v1351
      %v1747 = vsel %vm1718, %v1714, %v1353
      %v1748 = vsel %vm1718, %v1715, %v1355
      %v1749 = vsel %vm1718, %v1716, %v1357
      %v1750 = vsel %vm1718, %v1717, %v1359
      %vm1751 = vcmask 261120
      %v1752 = vsel %vm1751, %v1719, %v1425
      %v1753 = vsel %vm1751, %v1720, %v1427
      %v1754 = vsel %vm1751, %v1721, %v1429
      %v1755 = vsel %vm1751, %v1722, %v1431
      %v1756 = vsel %vm1751, %v1723, %v1433
      %v1757 = vsel %vm1751, %v1724, %v1435
      %v1758 = vsel %vm1751, %v1725, %v1437
      %v1759 = vsel %vm1751, %v1726, %v1439
      %v1760 = vsel %vm1751, %v1727, %v1441
      %v1761 = vsel %vm1751, %v1728, %v1443
      %v1762 = vsel %vm1751, %v1729, %v1445
      %v1763 = vsel %vm1751, %v1730, %v1447
      %v1764 = vsel %vm1751, %v1731, %v1449
      %v1765 = vsel %vm1751, %v1732, %v1451
      %v1766 = vsel %vm1751, %v1733, %v1453
      %v1767 = vsel %vm1751, %v1734, %v1455
      %v1768 = vsel %vm1751, %v1735, %v1457
      %v1769 = vsel %vm1751, %v1736, %v1459
      %v1770 = vsel %vm1751, %v1737, %v1461
      %v1771 = vsel %vm1751, %v1738, %v1463
      %v1772 = vsel %vm1751, %v1739, %v1465
      %v1773 = vsel %vm1751, %v1740, %v1467
      %v1774 = vsel %vm1751, %v1741, %v1469
      %v1775 = vsel %vm1751, %v1742, %v1471
      %v1776 = vsel %vm1751, %v1743, %v1473
      %v1777 = vsel %vm1751, %v1744, %v1475
      %v1778 = vsel %vm1751, %v1745, %v1477
      %v1779 = vsel %vm1751, %v1746, %v1479
      %v1780 = vsel %vm1751, %v1747, %v1481
      %v1781 = vsel %vm1751, %v1748, %v1483
      %v1782 = vsel %vm1751, %v1749, %v1485
      %v1783 = vsel %vm1751, %v1750, %v1487
      %v1784 = vld [vmem:[%s185] sm:$0xff]
      %v1785 = vld [vmem:[%s185 + $0x8] sm:$0xff]
      %v1786 = vld [vmem:[%s185 + $0x10] sm:$0xff]
      %v1787 = vld [vmem:[%s185 + $0x18] sm:$0xff]
      %v1788 = vld [vmem:[%s185 + $0x20] sm:$0xf]
      %vm1789 = vcmask 293888
      %v1791 = vsel %vm1789, %v1752, 0
      %v1794 = vsel %vm1789, %v1753, 0
      %v1797 = vsel %vm1789, %v1754, 0
      %v1800 = vsel %vm1789, %v1755, 0
      %v1803 = vsel %vm1789, %v1756, 0
      %v1806 = vsel %vm1789, %v1757, 0
      %v1809 = vsel %vm1789, %v1758, 0
      %v1812 = vsel %vm1789, %v1759, 0
      %v1815 = vsel %vm1789, %v1760, 0
      %v1818 = vsel %vm1789, %v1761, 0
      %v1821 = vsel %vm1789, %v1762, 0
      %v1824 = vsel %vm1789, %v1763, 0
      %v1827 = vsel %vm1789, %v1764, 0
      %v1830 = vsel %vm1789, %v1765, 0
      %v1833 = vsel %vm1789, %v1766, 0
      %v1836 = vsel %vm1789, %v1767, 0
      %v1839 = vsel %vm1789, %v1768, 0
      %v1842 = vsel %vm1789, %v1769, 0
      %v1845 = vsel %vm1789, %v1770, 0
      %v1848 = vsel %vm1789, %v1771, 0
      %v1851 = vsel %vm1789, %v1772, 0
      %v1854 = vsel %vm1789, %v1773, 0
      %v1857 = vsel %vm1789, %v1774, 0
      %v1860 = vsel %vm1789, %v1775, 0
      %v1863 = vsel %vm1789, %v1776, 0
      %v1866 = vsel %vm1789, %v1777, 0
      %v1869 = vsel %vm1789, %v1778, 0
      %v1872 = vsel %vm1789, %v1779, 0
      %v1875 = vsel %vm1789, %v1780, 0
      %v1878 = vsel %vm1789, %v1781, 0
      %v1881 = vsel %vm1789, %v1782, 0
      %v1884 = vsel %vm1789, %v1783, 0
      %vm1886 = vcmask 1043456
      %v1888 = vsel %vm1886, %v1788, 0
      %1890 = vmatpush.msra.mxu0 0.0
      %1891 = vmatpush.msra.mxu0 0.0
      %1892 = vmatpush.msra.mxu0 0.0
      %1893 = vmatpush.msra.mxu0 0.0
      %1894 = vmatpush.msra.mxu0 0.0
      %1895 = vmatpush.msra.mxu0 0.0
      %1896 = vmatpush.msra.mxu0 0.0
      %1897 = vmatpush.msra.mxu0 0.0
      %1898 = vmatpush.msra.mxu0 0.0
      %1899 = vmatpush.msra.mxu0 0.0
      %1900 = vmatpush.msra.mxu0 0.0
      %1901 = vmatpush.msra.mxu0 %v1888
      %1902 = vmatpush.msra.mxu0 %v1787
      %1903 = vmatpush.msra.mxu0 %v1786
      %1904 = vmatpush.msra.mxu0 %v1785
      %1905 = vmatpush.msra.mxu0 %v1784
      %1906 = vmatmul.f32.gmra.mxu0 %v1791
      %v1907 = vpop.f32.mrf.mxu0
      %v1908 = vadd.f32 0.0, %v1907
      %1909 = vmatmul.f32.gmra.mxu0 %v1794
      %v1910 = vpop.f32.mrf.mxu0
      %v1911 = vadd.f32 0.0, %v1910
      %1912 = vmatmul.f32.gmra.mxu0 %v1797
      %v1913 = vpop.f32.mrf.mxu0
      %v1914 = vadd.f32 0.0, %v1913
      %1915 = vmatmul.f32.gmra.mxu0 %v1800
      %v1916 = vpop.f32.mrf.mxu0
      %v1917 = vadd.f32 0.0, %v1916
      %1918 = vmatmul.f32.gmra.mxu0 %v1803
      %v1919 = vpop.f32.mrf.mxu0
      %v1920 = vadd.f32 0.0, %v1919
      %1921 = vmatmul.f32.gmra.mxu0 %v1806
      %v1922 = vpop.f32.mrf.mxu0
      %v1923 = vadd.f32 0.0, %v1922
      %1924 = vmatmul.f32.gmra.mxu0 %v1809
      %v1925 = vpop.f32.mrf.mxu0
      %v1926 = vadd.f32 0.0, %v1925
      %1927 = vmatmul.f32.gmra.mxu0 %v1812
      %v1928 = vpop.f32.mrf.mxu0
      %v1929 = vadd.f32 0.0, %v1928
      %1930 = vmatmul.f32.gmra.mxu0 %v1815
      %v1931 = vpop.f32.mrf.mxu0
      %v1932 = vadd.f32 0.0, %v1931
      %1933 = vmatmul.f32.gmra.mxu0 %v1818
      %v1934 = vpop.f32.mrf.mxu0
      %v1935 = vadd.f32 0.0, %v1934
      %1936 = vmatmul.f32.gmra.mxu0 %v1821
      %v1937 = vpop.f32.mrf.mxu0
      %v1938 = vadd.f32 0.0, %v1937
      %1939 = vmatmul.f32.gmra.mxu0 %v1824
      %v1940 = vpop.f32.mrf.mxu0
      %v1941 = vadd.f32 0.0, %v1940
      %1942 = vmatmul.f32.gmra.mxu0 %v1827
      %v1943 = vpop.f32.mrf.mxu0
      %v1944 = vadd.f32 0.0, %v1943
      %1945 = vmatmul.f32.gmra.mxu0 %v1830
      %v1946 = vpop.f32.mrf.mxu0
      %v1947 = vadd.f32 0.0, %v1946
      %1948 = vmatmul.f32.gmra.mxu0 %v1833
      %v1949 = vpop.f32.mrf.mxu0
      %v1950 = vadd.f32 0.0, %v1949
      %1951 = vmatmul.f32.gmra.mxu0 %v1836
      %v1952 = vpop.f32.mrf.mxu0
      %v1953 = vadd.f32 0.0, %v1952
      %1954 = vmatmul.f32.gmra.mxu0 %v1839
      %v1955 = vpop.f32.mrf.mxu0
      %v1956 = vadd.f32 0.0, %v1955
      %1957 = vmatmul.f32.gmra.mxu0 %v1842
      %v1958 = vpop.f32.mrf.mxu0
      %v1959 = vadd.f32 0.0, %v1958
      %1960 = vmatmul.f32.gmra.mxu0 %v1845
      %v1961 = vpop.f32.mrf.mxu0
      %v1962 = vadd.f32 0.0, %v1961
      %1963 = vmatmul.f32.gmra.mxu0 %v1848
      %v1964 = vpop.f32.mrf.mxu0
      %v1965 = vadd.f32 0.0, %v1964
      %1966 = vmatmul.f32.gmra.mxu0 %v1851
      %v1967 = vpop.f32.mrf.mxu0
      %v1968 = vadd.f32 0.0, %v1967
      %1969 = vmatmul.f32.gmra.mxu0 %v1854
      %v1970 = vpop.f32.mrf.mxu0
      %v1971 = vadd.f32 0.0, %v1970
      %1972 = vmatmul.f32.gmra.mxu0 %v1857
      %v1973 = vpop.f32.mrf.mxu0
      %v1974 = vadd.f32 0.0, %v1973
      %1975 = vmatmul.f32.gmra.mxu0 %v1860
      %v1976 = vpop.f32.mrf.mxu0
      %v1977 = vadd.f32 0.0, %v1976
      %1978 = vmatmul.f32.gmra.mxu0 %v1863
      %v1979 = vpop.f32.mrf.mxu0
      %v1980 = vadd.f32 0.0, %v1979
      %1981 = vmatmul.f32.gmra.mxu0 %v1866
      %v1982 = vpop.f32.mrf.mxu0
      %v1983 = vadd.f32 0.0, %v1982
      %1984 = vmatmul.f32.gmra.mxu0 %v1869
      %v1985 = vpop.f32.mrf.mxu0
      %v1986 = vadd.f32 0.0, %v1985
      %1987 = vmatmul.f32.gmra.mxu0 %v1872
      %v1988 = vpop.f32.mrf.mxu0
      %v1989 = vadd.f32 0.0, %v1988
      %1990 = vmatmul.f32.gmra.mxu0 %v1875
      %v1991 = vpop.f32.mrf.mxu0
      %v1992 = vadd.f32 0.0, %v1991
      %1993 = vmatmul.f32.gmra.mxu0 %v1878
      %v1994 = vpop.f32.mrf.mxu0
      %v1995 = vadd.f32 0.0, %v1994
      %1996 = vmatmul.f32.gmra.mxu0 %v1881
      %v1997 = vpop.f32.mrf.mxu0
      %v1998 = vadd.f32 0.0, %v1997
      %1999 = vmatmul.f32.gmra.mxu0 %v1884
      %v2000 = vpop.f32.mrf.mxu0
      %v2001 = vadd.f32 0.0, %v2000
      %2002 = vdwg.mxu0
      %v2003 = vmul.f32 %v1908, 0.1
      %v2004 = vmul.f32 %v1911, 0.1
      %v2005 = vmul.f32 %v1914, 0.1
      %v2006 = vmul.f32 %v1917, 0.1
      %v2007 = vmul.f32 %v1920, 0.1
      %v2008 = vmul.f32 %v1923, 0.1
      %v2009 = vmul.f32 %v1926, 0.1
      %v2010 = vmul.f32 %v1929, 0.1
      %v2011 = vmul.f32 %v1932, 0.1
      %v2012 = vmul.f32 %v1935, 0.1
      %v2013 = vmul.f32 %v1938, 0.1
      %v2014 = vmul.f32 %v1941, 0.1
      %v2015 = vmul.f32 %v1944, 0.1
      %v2016 = vmul.f32 %v1947, 0.1
      %v2017 = vmul.f32 %v1950, 0.1
      %v2018 = vmul.f32 %v1953, 0.1
      %v2019 = vmul.f32 %v1956, 0.1
      %v2020 = vmul.f32 %v1959, 0.1
      %v2021 = vmul.f32 %v1962, 0.1
      %v2022 = vmul.f32 %v1965, 0.1
      %v2023 = vmul.f32 %v1968, 0.1
      %v2024 = vmul.f32 %v1971, 0.1
      %v2025 = vmul.f32 %v1974, 0.1
      %v2026 = vmul.f32 %v1977, 0.1
      %v2027 = vmul.f32 %v1980, 0.1
      %v2028 = vmul.f32 %v1983, 0.1
      %v2029 = vmul.f32 %v1986, 0.1
      %v2030 = vmul.f32 %v1989, 0.1
      %v2031 = vmul.f32 %v1992, 0.1
      %v2032 = vmul.f32 %v1995, 0.1
      %v2033 = vmul.f32 %v1998, 0.1
      %v2034 = vmul.f32 %v2001, 0.1
      %v2035 = vmax.f32 %v1908, %v2003
      %v2036 = vmax.f32 %v1911, %v2004
      %v2037 = vmax.f32 %v1914, %v2005
      %v2038 = vmax.f32 %v1917, %v2006
      %v2039 = vmax.f32 %v1920, %v2007
      %v2040 = vmax.f32 %v1923, %v2008
      %v2041 = vmax.f32 %v1926, %v2009
      %v2042 = vmax.f32 %v1929, %v2010
      %v2043 = vmax.f32 %v1932, %v2011
      %v2044 = vmax.f32 %v1935, %v2012
      %v2045 = vmax.f32 %v1938, %v2013
      %v2046 = vmax.f32 %v1941, %v2014
      %v2047 = vmax.f32 %v1944, %v2015
      %v2048 = vmax.f32 %v1947, %v2016
      %v2049 = vmax.f32 %v1950, %v2017
      %v2050 = vmax.f32 %v1953, %v2018
      %v2051 = vmax.f32 %v1956, %v2019
      %v2052 = vmax.f32 %v1959, %v2020
      %v2053 = vmax.f32 %v1962, %v2021
      %v2054 = vmax.f32 %v1965, %v2022
      %v2055 = vmax.f32 %v1968, %v2023
      %v2056 = vmax.f32 %v1971, %v2024
      %v2057 = vmax.f32 %v1974, %v2025
      %v2058 = vmax.f32 %v1977, %v2026
      %v2059 = vmax.f32 %v1980, %v2027
      %v2060 = vmax.f32 %v1983, %v2028
      %v2061 = vmax.f32 %v1986, %v2029
      %v2062 = vmax.f32 %v1989, %v2030
      %v2063 = vmax.f32 %v1992, %v2031
      %v2064 = vmax.f32 %v1995, %v2032
      %v2065 = vmax.f32 %v1998, %v2033
      %v2066 = vmax.f32 %v2001, %v2034
      %2067 = vst.msk [vmem:[%s197] sm:$0xff] %vm1553, %v2035
      %2068 = vst.msk [vmem:[%s197 + $0x8] sm:$0xff] %vm1553, %v2036
      %2069 = vst.msk [vmem:[%s197 + $0x10] sm:$0xff] %vm1553, %v2037
      %2070 = vst.msk [vmem:[%s197 + $0x18] sm:$0xff] %vm1553, %v2038
      %2071 = vst.msk [vmem:[%s197 + $0x20] sm:$0xff] %vm1553, %v2039
      %2072 = vst.msk [vmem:[%s197 + $0x28] sm:$0xff] %vm1553, %v2040
      %2073 = vst.msk [vmem:[%s197 + $0x30] sm:$0xff] %vm1553, %v2041
      %2074 = vst.msk [vmem:[%s197 + $0x38] sm:$0xff] %vm1553, %v2042
      %2075 = vst.msk [vmem:[%s197 + $0x40] sm:$0xff] %vm1553, %v2043
      %2076 = vst.msk [vmem:[%s197 + $0x48] sm:$0xff] %vm1553, %v2044
      %2077 = vst.msk [vmem:[%s197 + $0x50] sm:$0xff] %vm1553, %v2045
      %2078 = vst.msk [vmem:[%s197 + $0x58] sm:$0xff] %vm1553, %v2046
      %2079 = vst.msk [vmem:[%s197 + $0x60] sm:$0xff] %vm1553, %v2047
      %2080 = vst.msk [vmem:[%s197 + $0x68] sm:$0xff] %vm1553, %v2048
      %2081 = vst.msk [vmem:[%s197 + $0x70] sm:$0xff] %vm1553, %v2049
      %2082 = vst.msk [vmem:[%s197 + $0x78] sm:$0xff] %vm1553, %v2050
      %2083 = vst.msk [vmem:[%s197 + $0x80] sm:$0xff] %vm1553, %v2051
      %2084 = vst.msk [vmem:[%s197 + $0x88] sm:$0xff] %vm1553, %v2052
      %2085 = vst.msk [vmem:[%s197 + $0x90] sm:$0xff] %vm1553, %v2053
      %2086 = vst.msk [vmem:[%s197 + $0x98] sm:$0xff] %vm1553, %v2054
      %2087 = vst.msk [vmem:[%s197 + $0xa0] sm:$0xff] %vm1553, %v2055
      %2088 = vst.msk [vmem:[%s197 + $0xa8] sm:$0xff] %vm1553, %v2056
      %2089 = vst.msk [vmem:[%s197 + $0xb0] sm:$0xff] %vm1553, %v2057
      %2090 = vst.msk [vmem:[%s197 + $0xb8] sm:$0xff] %vm1553, %v2058
      %2091 = vst.msk [vmem:[%s197 + $0xc0] sm:$0xff] %vm1553, %v2059
      %2092 = vst.msk [vmem:[%s197 + $0xc8] sm:$0xff] %vm1553, %v2060
      %2093 = vst.msk [vmem:[%s197 + $0xd0] sm:$0xff] %vm1553, %v2061
      %2094 = vst.msk [vmem:[%s197 + $0xd8] sm:$0xff] %vm1553, %v2062
      %2095 = vst.msk [vmem:[%s197 + $0xe0] sm:$0xff] %vm1553, %v2063
      %2096 = vst.msk [vmem:[%s197 + $0xe8] sm:$0xff] %vm1553, %v2064
      %2097 = vst.msk [vmem:[%s197 + $0xf0] sm:$0xff] %vm1553, %v2065
      %2098 = vst.msk [vmem:[%s197 + $0xf8] sm:$0xff] %vm1553, %v2066
      %s2099 = smul.u32 32, %s20
      %p2100 = scmp.lt.s32.totalorder %s18, 1
      %s2101 = scalar_select %p2100, %s18, 1
      %p2102 = scmp.lt.s32.totalorder %s2099, 31
      %s2103 = scalar_select %p2102, %s2099, 31
      %p2104 = scmp.lt.s32.totalorder %s19, 0
      %s2105 = scalar_select %p2104, %s19, 0
      %s2106 = sadd.s32 %s2105, %s2103
      %s2107 = smul.addr %s2101, 32
      %s2108 = sadd.s32 %s2106, %s2107
      %s2109 = smul.addr %s2108, 8
      %s2110 = scalar_lea.vmem %s2, %s2109
      // Predicated region
      $region29: #{convention_forward.1} parent=27 // pred_check
        %p2111 = pneg %p106
      $region30: #{convention_forward.1} parent=27 // pred_check_branch
        %2113 = sbr.rel (%p2111) target = $region32
      $region31: #{convention_forward.1} parent=27 // pred_region
        %s2114 = smul.u32 32, %s20
      $region32: #{convention_forward.1} parent=27 // pred_fallthru
        _
    $region28: #{convention_forward.1} parent=5 // pred_fallthru
      _
    %p2115 = scmp.le.s32.totalorder 2, %s8
    // Predicated region
    $region33: #{convention_forward.1} parent=5 // pred_check
      %p2116 = pneg %p2115
    $region34: #{convention_forward.1} parent=5 // pred_check_branch
      %2118 = sbr.rel (%p2116) target = $region36
    $region35: #{convention_forward.1} parent=5 // pred_region
      %s2119 = ssub.s32 %s8, 2
      // Predicated region
      $region37: #{convention_forward.1} parent=35 // pred_check
        %p2120 = pneg %p112
      $region38: #{convention_forward.1} parent=35 // pred_check_branch
        %2122 = sbr.rel (%p2120) target = $region40
      $region39: #{convention_forward.1} parent=35 // pred_region
        %s2123 = smul.u32 32, %s23
        %p2124 = scmp.lt.s32.totalorder %s21, 1
        %s2125 = scalar_select %p2124, %s21, 1
        %p2126 = scmp.lt.s32.totalorder %s2123, 31
        %s2127 = scalar_select %p2126, %s2123, 31
        %p2128 = scmp.lt.s32.totalorder %s22, 0
        %s2129 = scalar_select %p2128, %s22, 0
        %s2130 = sadd.s32 %s2129, %s2127
        %s2131 = smul.addr %s2125, 32
        %s2132 = sadd.s32 %s2130, %s2131
        %s2133 = smul.addr %s2132, 8
        %s2134 = scalar_lea.vmem %s2, %s2133
      $region40: #{convention_forward.1} parent=35 // pred_fallthru
        _
    $region36: #{convention_forward.1} parent=5 // pred_fallthru
      _
  $region6: #{convention_forward.1} parent=0 // loop_footer
    %s12 = sadd.s32 1, %s8
  $region7: #{convention_forward.1} parent=0 // loop_footer_branch
    %7 = sbr.rel target = $region3
  $region8: #{convention_forward.1} parent=0 // loop_exit
    _

</llo_original>
